<compile_context>
chip_gen: v5e
topology: v5e:2x2
jax: 0.10.0
libtpu: 0.0.40
codegen_flags: <defaults>
</compile_context>

<pallas_src>
import functools

import jax
import jax.numpy as jnp
from jax.experimental import pallas as pl
from jax.experimental.pallas import tpu as pltpu


# ----------------------------- Pallas kernels ------------------------------ #

def _mm_bias_kernel(x_ref, w_ref, b_ref, o_ref):
    # x_ref: (TM, K) bf16, w_ref: (K, Nc) bf16, b_ref: (1, Nc) f32
    y = jnp.dot(x_ref[...], w_ref[...], preferred_element_type=jnp.float32)
    o_ref[...] = (y + b_ref[...]).astype(o_ref.dtype)


def _mm_bias_add_relu_kernel(x_ref, w_ref, b_ref, r_ref, o_ref):
    # Same as above, fused with residual add + ReLU (final op of CDC_1).
    y = jnp.dot(x_ref[...], w_ref[...], preferred_element_type=jnp.float32)
    y = y + b_ref[...] + r_ref[...].astype(jnp.float32)
    o_ref[...] = jnp.maximum(y, 0.0).astype(o_ref.dtype)


# ------------------------------- Wrappers ----------------------------------- #

def _row_tile(m):
    """Largest row tile that divides M, keeps >=2 grid steps (v7x megacore),
    is a multiple of 8, and stays within a comfortable VMEM budget."""
    for t in (2048, 1024, 512, 256, 128, 64, 32, 16, 8):
        if m % t == 0 and m // t >= 2:
            return t
    return m  # single whole-array block (block == full dims is always legal)


def matmul_bias(x2d, w, b, res=None, out_dtype=jnp.bfloat16):
    """y = x2d @ w + b  (optionally + res, then ReLU).  x2d: (M, K)."""
    M, K = x2d.shape
    Nc = w.shape[1]
    TM = _row_tile(M)

    in_specs = [
        pl.BlockSpec((TM, K), lambda i: (i, 0)),
        pl.BlockSpec((K, Nc), lambda i: (0, 0)),
        pl.BlockSpec((1, Nc), lambda i: (0, 0)),
    ]
    args = [x2d, w, b]
    if res is None:
        kern = _mm_bias_kernel
    else:
        kern = _mm_bias_add_relu_kernel
        in_specs.append(pl.BlockSpec((TM, Nc), lambda i: (i, 0)))
        args.append(res)

    return pl.pallas_call(
        kern,
        grid=(M // TM,),
        out_shape=jax.ShapeDtypeStruct((M, Nc), out_dtype),
        in_specs=in_specs,
        out_specs=pl.BlockSpec((TM, Nc), lambda i: (i, 0)),
        compiler_params=pltpu.CompilerParams(
            dimension_semantics=("parallel",)),
    )(*args)


def im2col_3x3(x_nhwc, dilation):
    """Lane-dense im2col for a 3x3 conv with padding == dilation.

    x: (N,H,W,C) -> (N*H*W, 9*C), channel order tap-major / channel-inner,
    matching weights stored as (9, C, Cout).reshape(9*C, Cout).
    Single XLA op chain (pad + 9 static slices + one concat); done in the
    wrapper because it is pure data movement.
    """
    N, H, W, C = x_nhwc.shape
    d = dilation
    xp = jnp.pad(x_nhwc, ((0, 0), (d, d), (d, d), (0, 0)))
    taps = [xp[:, ky * d:ky * d + H, kx * d:kx * d + W, :]
            for ky in range(3) for kx in range(3)]
    return jnp.concatenate(taps, axis=-1).reshape(N * H * W, 9 * C)


# --------------------------- Parameter creation ----------------------------- #

def _init_bn(key, c):
    k1, k2, k3, k4 = jax.random.split(key, 4)
    gamma = jax.random.uniform(k1, (c,), minval=0.5, maxval=1.5)
    beta = jax.random.normal(k2, (c,)) * 0.1
    mean = jax.random.normal(k3, (c,)) * 0.1
    var = jax.random.uniform(k4, (c,), minval=0.5, maxval=1.5)
    eps = 1e-5
    scale = gamma / jnp.sqrt(var + eps)
    bias = beta - mean * scale
    return scale.astype(jnp.float32), bias.astype(jnp.float32)


def _init_conv1x1(key, cin, cout):
    return jax.random.normal(key, (cin, cout), jnp.float32) * 0.1


def _init_conv3x3(key, cin, cout):
    return jax.random.normal(key, (9, cin, cout), jnp.float32) * 0.05


def init_cdc1_params(key, in_ch, out_ch):
    ks = jax.random.split(key, 24)
    p = {}
    p["res_w"] = _init_conv1x1(ks[0], in_ch, out_ch)
    p["res_s"], p["res_b"] = _init_bn(ks[1], out_ch)
    p["b0_w"] = _init_conv1x1(ks[2], in_ch, out_ch)
    p["b0_s"], p["b0_b"] = _init_bn(ks[3], out_ch)
    p["b1a_w"] = _init_conv1x1(ks[4], out_ch, out_ch)
    p["b1a_s"], p["b1a_b"] = _init_bn(ks[5], out_ch)
    p["b1b_w"] = _init_conv3x3(ks[6], out_ch, out_ch)
    p["b1b_s"], p["b1b_b"] = _init_bn(ks[7], out_ch)
    p["b2a_w"] = _init_conv1x1(ks[8], out_ch, out_ch)
    p["b2a_s"], p["b2a_b"] = _init_bn(ks[9], out_ch)
    p["b2b_w"] = _init_conv3x3(ks[10], out_ch, out_ch)
    p["b2b_s"], p["b2b_b"] = _init_bn(ks[11], out_ch)
    p["b3a_w"] = _init_conv1x1(ks[12], out_ch, out_ch)
    p["b3a_s"], p["b3a_b"] = _init_bn(ks[13], out_ch)
    p["b3b_w"] = _init_conv3x3(ks[14], out_ch, out_ch)
    p["b3b_s"], p["b3b_b"] = _init_bn(ks[15], out_ch)
    p["cat_w"] = _init_conv3x3(ks[16], 4 * out_ch, out_ch)
    p["cat_s"], p["cat_b"] = _init_bn(ks[17], out_ch)
    return p


def fold_cdc1_params(p):
    """Fold BN into conv weights, compose consecutive affine 1x1 convs, and
    flatten 3x3 weights to (9*Cin, Cout).  Composition done in f32, weights
    stored bf16 (MXU), biases kept f32."""
    def f1(w, s):                      # 1x1: (Cin, Cout) * scale
        return w * s[None, :]

    def f3(w, s):                      # 3x3: (9, Cin, Cout) * scale -> flat
        return (w * s[None, None, :]).reshape(-1, w.shape[-1])

    G_res, c_res = f1(p["res_w"], p["res_s"]), p["res_b"]
    G_b0, c_b0 = f1(p["b0_w"], p["b0_s"]), p["b0_b"]
    G_1a, c_1a = f1(p["b1a_w"], p["b1a_s"]), p["b1a_b"]
    Gf_1b, c_1b = f3(p["b1b_w"], p["b1b_s"]), p["b1b_b"]
    G_2a, c_2a = f1(p["b2a_w"], p["b2a_s"]), p["b2a_b"]
    Gf_2b, c_2b = f3(p["b2b_w"], p["b2b_s"]), p["b2b_b"]
    G_3a, c_3a = f1(p["b3a_w"], p["b3a_s"]), p["b3a_b"]
    Gf_3b, c_3b = f3(p["b3b_w"], p["b3b_s"]), p["b3b_b"]
    Gf_c, c_c = f3(p["cat_w"], p["cat_s"]), p["cat_b"]

    # kernel 0: x -> [x0 | res | h1]   (b0, conv1x1-residual, b0∘b1a composed)
    w0 = jnp.concatenate([G_b0, G_res, G_b0 @ G_1a], axis=1)
    b0 = jnp.concatenate([c_b0, c_res, c_b0 @ G_1a + c_1a])
    # kernel 1: cols(h1, d=3) -> [x1 | h2]   (b1b, b1b∘b2a)
    w1 = jnp.concatenate([Gf_1b, Gf_1b @ G_2a], axis=1)
    b1 = jnp.concatenate([c_1b, c_1b @ G_2a + c_2a])
    # kernel 2: cols(h2, d=5) -> [x2 | h3]   (b2b, b2b∘b3a)
    w2 = jnp.concatenate([Gf_2b, Gf_2b @ G_3a], axis=1)
    b2 = jnp.concatenate([c_2b, c_2b @ G_3a + c_3a])
    # kernel 3: cols(h3, d=7) -> x3
    w3, b3 = Gf_3b, c_3b
    # kernel 4: cols(cat, d=1) -> relu(conv_cat + res)
    wc, bc = Gf_c, c_c

    bf, f32 = jnp.bfloat16, jnp.float32
    return {
        "w0": w0.astype(bf), "b0": b0.reshape(1, -1).astype(f32),
        "w1": w1.astype(bf), "b1": b1.reshape(1, -1).astype(f32),
        "w2": w2.astype(bf), "b2": b2.reshape(1, -1).astype(f32),
        "w3": w3.astype(bf), "b3": b3.reshape(1, -1).astype(f32),
        "wc": wc.astype(bf), "bc": bc.reshape(1, -1).astype(f32),
    }


# ------------------------------ CDC_1 forward ------------------------------- #

def cdc1_forward(x_nhwc, fp, out_ch):
    """Mirrors CDC_1.forward.  x_nhwc: (N,H,W,in_ch) -> (N,H,W,out_ch)."""
    N, H, W, Cin = x_nhwc.shape
    C = out_ch
    M = N * H * W
    xb = x_nhwc.astype(jnp.bfloat16).reshape(M, Cin)

    # 1x1 convs of res / branch0 / branch1a fused into one matmul.
    y0 = matmul_bias(xb, fp["w0"], fp["b0"])            # (M, 3C) bf16
    x0 = y0[:, :C]
    res = y0[:, C:2 * C]
    h1 = y0[:, 2 * C:]

    # branch1 3x3 (d=3) fused with branch2's 1x1.
    cols1 = im2col_3x3(h1.reshape(N, H, W, C), 3)       # (M, 9C)
    y1 = matmul_bias(cols1, fp["w1"], fp["b1"])         # (M, 2C)
    x1, h2 = y1[:, :C], y1[:, C:]

    # branch2 3x3 (d=5) fused with branch3's 1x1.
    cols2 = im2col_3x3(h2.reshape(N, H, W, C), 5)
    y2 = matmul_bias(cols2, fp["w2"], fp["b2"])
    x2, h3 = y2[:, :C], y2[:, C:]

    # branch3 3x3 (d=7).
    cols3 = im2col_3x3(h3.reshape(N, H, W, C), 7)
    x3 = matmul_bias(cols3, fp["w3"], fp["b3"])         # (M, C)

    # conv_cat (3x3, d=1) + BN fused with (+ res) and ReLU inside the kernel.
    xcat = jnp.concatenate([x0, x1, x2, x3], axis=-1)   # (M, 4C)
    colsc = im2col_3x3(xcat.reshape(N, H, W, 4 * C), 1)  # (M, 36C)
    out = matmul_bias(colsc, fp["wc"], fp["bc"], res=res,
                      out_dtype=jnp.float32)            # (M, C) f32
    return out.reshape(N, H, W, C)


# ---------------------------------- Main ------------------------------------ #

if __name__ == "__main__":
    key = jax.random.PRNGKey(0)
    kx, kp = jax.random.split(key)

    in_ch, out_ch = 8, 8
    N, H, W = 2, 16, 16

    # PyTorch-convention NCHW input, transposed to NHWC for the kernels.
    x_nchw = jax.random.normal(kx, (N, in_ch, H, W), jnp.float32)
    x_nhwc = jnp.transpose(x_nchw, (0, 2, 3, 1))

    raw_params = init_cdc1_params(kp, in_ch, out_ch)
    params = fold_cdc1_params(raw_params)

    fwd = jax.jit(functools.partial(cdc1_forward, out_ch=out_ch))
    y_nhwc = fwd(x_nhwc, params)
    y_nchw = jnp.transpose(y_nhwc, (0, 3, 1, 2))  # back to PyTorch layout
    jax.block_until_ready(y_nchw)

    assert y_nchw.shape == (N, out_ch, H, W)
    assert bool(jnp.all(jnp.isfinite(y_nchw)))
    assert bool(jnp.all(y_nchw >= 0.0))  # final ReLU
    print("KERNEL_OK")
</pallas_src>

<mosaic_0001>
module attributes {stable_mosaic.version = 11 : i64} {
  func.func @_mm_bias_kernel(%arg0: i32, %arg1: memref<256x8xbf16, #tpu.memory_space<vmem>>, %arg2: memref<8x24xbf16, #tpu.memory_space<vmem>>, %arg3: memref<1x24xf32, #tpu.memory_space<vmem>>, %arg4: memref<256x24xbf16, #tpu.memory_space<vmem>>) attributes {dimension_semantics = [#tpu.dimension_semantics<parallel>], iteration_bounds = array<i64: 2>, scalar_prefetch = 0 : i64, scratch_operands = 0 : i64, tpu.core_type = #tpu.core_type<tc>, window_params = [{transform_indices = @transform_0, window_bounds = array<i64: 256, 8>}, {pipeline_mode = #tpu.pipeline_mode<synchronous>, transform_indices = @transform_1, window_bounds = array<i64: 8, 24>}, {pipeline_mode = #tpu.pipeline_mode<synchronous>, transform_indices = @transform_2, window_bounds = array<i64: 1, 24>}, {transform_indices = @transform_3, window_bounds = array<i64: 256, 24>}]} {
    %c0 = arith.constant 0 : index
    %c0_0 = arith.constant 0 : index
    %0 = vector.load %arg1[%c0, %c0_0] : memref<256x8xbf16, #tpu.memory_space<vmem>>, vector<256x8xbf16>
    %c0_1 = arith.constant 0 : index
    %c0_2 = arith.constant 0 : index
    %1 = vector.load %arg2[%c0_1, %c0_2] : memref<8x24xbf16, #tpu.memory_space<vmem>>, vector<8x24xbf16>
    %cst = arith.constant dense<0.000000e+00> : vector<256x24xf32>
    %2 = tpu.matmul %0, %1, %cst {dimension_numbers = #tpu.dot_dimension_numbers<[1], [0], [0], [1], [0, 0, 1, 1], [], []>} : vector<256x8xbf16>, vector<8x24xbf16>, vector<256x24xf32> -> vector<256x24xf32>
    %c0_3 = arith.constant 0 : index
    %c0_4 = arith.constant 0 : index
    %3 = vector.load %arg3[%c0_3, %c0_4] : memref<1x24xf32, #tpu.memory_space<vmem>>, vector<1x24xf32>
    %4 = vector.broadcast %3 : vector<1x24xf32> to vector<256x24xf32>
    %5 = arith.addf %2, %4 : vector<256x24xf32>
    %6 = arith.truncf %5 : vector<256x24xf32> to vector<256x24xbf16>
    %c0_5 = arith.constant 0 : index
    %c0_6 = arith.constant 0 : index
    %7 = vector.load %arg4[%c0_5, %c0_6] : memref<256x24xbf16, #tpu.memory_space<vmem>>, vector<256x24xbf16>
    tpu.vector_store %arg4[%c0_5, %c0_6], %6 {strides = array<i32>} : memref<256x24xbf16, #tpu.memory_space<vmem>>, vector<256x24xbf16>,
    return
  }
  func.func @transform_0(%arg0: i32) -> (i32, i32) {
    %c0_i32 = arith.constant 0 : i32
    %c0_i32_0 = arith.constant 0 : i32
    return %arg0, %c0_i32 : i32, i32
  }
  func.func @transform_1(%arg0: i32) -> (i32, i32) {
    %c0_i32 = arith.constant 0 : i32
    %c0_i32_0 = arith.constant 0 : i32
    %c0_i32_1 = arith.constant 0 : i32
    return %c0_i32, %c0_i32_0 : i32, i32
  }
  func.func @transform_2(%arg0: i32) -> (i32, i32) {
    %c0_i32 = arith.constant 0 : i32
    %c0_i32_0 = arith.constant 0 : i32
    %c0_i32_1 = arith.constant 0 : i32
    return %c0_i32, %c0_i32_0 : i32, i32
  }
  func.func @transform_3(%arg0: i32) -> (i32, i32) {
    %c0_i32 = arith.constant 0 : i32
    %c0_i32_0 = arith.constant 0 : i32
    return %arg0, %c0_i32 : i32, i32
  }
}

module attributes {stable_mosaic.version = 11 : i64} {
  func.func @_mm_bias_kernel(%arg0: i32, %arg1: memref<256x72xbf16, #tpu.memory_space<vmem>>, %arg2: memref<72x16xbf16, #tpu.memory_space<vmem>>, %arg3: memref<1x16xf32, #tpu.memory_space<vmem>>, %arg4: memref<256x16xbf16, #tpu.memory_space<vmem>>) attributes {dimension_semantics = [#tpu.dimension_semantics<parallel>], iteration_bounds = array<i64: 2>, scalar_prefetch = 0 : i64, scratch_operands = 0 : i64, tpu.core_type = #tpu.core_type<tc>, window_params = [{transform_indices = @transform_0, window_bounds = array<i64: 256, 72>}, {pipeline_mode = #tpu.pipeline_mode<synchronous>, transform_indices = @transform_1, window_bounds = array<i64: 72, 16>}, {pipeline_mode = #tpu.pipeline_mode<synchronous>, transform_indices = @transform_2, window_bounds = array<i64: 1, 16>}, {transform_indices = @transform_3, window_bounds = array<i64: 256, 16>}]} {
    %c0 = arith.constant 0 : index
    %c0_0 = arith.constant 0 : index
    %0 = vector.load %arg1[%c0, %c0_0] : memref<256x72xbf16, #tpu.memory_space<vmem>>, vector<256x72xbf16>
    %c0_1 = arith.constant 0 : index
    %c0_2 = arith.constant 0 : index
    %1 = vector.load %arg2[%c0_1, %c0_2] : memref<72x16xbf16, #tpu.memory_space<vmem>>, vector<72x16xbf16>
    %cst = arith.constant dense<0.000000e+00> : vector<256x16xf32>
    %2 = tpu.matmul %0, %1, %cst {dimension_numbers = #tpu.dot_dimension_numbers<[1], [0], [0], [1], [0, 0, 1, 1], [], []>} : vector<256x72xbf16>, vector<72x16xbf16>, vector<256x16xf32> -> vector<256x16xf32>
    %c0_3 = arith.constant 0 : index
    %c0_4 = arith.constant 0 : index
    %3 = vector.load %arg3[%c0_3, %c0_4] : memref<1x16xf32, #tpu.memory_space<vmem>>, vector<1x16xf32>
    %4 = vector.broadcast %3 : vector<1x16xf32> to vector<256x16xf32>
    %5 = arith.addf %2, %4 : vector<256x16xf32>
    %6 = arith.truncf %5 : vector<256x16xf32> to vector<256x16xbf16>
    %c0_5 = arith.constant 0 : index
    %c0_6 = arith.constant 0 : index
    %7 = vector.load %arg4[%c0_5, %c0_6] : memref<256x16xbf16, #tpu.memory_space<vmem>>, vector<256x16xbf16>
    tpu.vector_store %arg4[%c0_5, %c0_6], %6 {strides = array<i32>} : memref<256x16xbf16, #tpu.memory_space<vmem>>, vector<256x16xbf16>,
    return
  }
  func.func @transform_0(%arg0: i32) -> (i32, i32) {
    %c0_i32 = arith.constant 0 : i32
    %c0_i32_0 = arith.constant 0 : i32
    return %arg0, %c0_i32 : i32, i32
  }
  func.func @transform_1(%arg0: i32) -> (i32, i32) {
    %c0_i32 = arith.constant 0 : i32
    %c0_i32_0 = arith.constant 0 : i32
    %c0_i32_1 = arith.constant 0 : i32
    return %c0_i32, %c0_i32_0 : i32, i32
  }
  func.func @transform_2(%arg0: i32) -> (i32, i32) {
    %c0_i32 = arith.constant 0 : i32
    %c0_i32_0 = arith.constant 0 : i32
    %c0_i32_1 = arith.constant 0 : i32
    return %c0_i32, %c0_i32_0 : i32, i32
  }
  func.func @transform_3(%arg0: i32) -> (i32, i32) {
    %c0_i32 = arith.constant 0 : i32
    %c0_i32_0 = arith.constant 0 : i32
    return %arg0, %c0_i32 : i32, i32
  }
}

module attributes {stable_mosaic.version = 11 : i64} {
  func.func @_mm_bias_kernel(%arg0: i32, %arg1: memref<256x72xbf16, #tpu.memory_space<vmem>>, %arg2: memref<72x8xbf16, #tpu.memory_space<vmem>>, %arg3: memref<1x8xf32, #tpu.memory_space<vmem>>, %arg4: memref<256x8xbf16, #tpu.memory_space<vmem>>) attributes {dimension_semantics = [#tpu.dimension_semantics<parallel>], iteration_bounds = array<i64: 2>, scalar_prefetch = 0 : i64, scratch_operands = 0 : i64, tpu.core_type = #tpu.core_type<tc>, window_params = [{transform_indices = @transform_0, window_bounds = array<i64: 256, 72>}, {pipeline_mode = #tpu.pipeline_mode<synchronous>, transform_indices = @transform_1, window_bounds = array<i64: 72, 8>}, {pipeline_mode = #tpu.pipeline_mode<synchronous>, transform_indices = @transform_2, window_bounds = array<i64: 1, 8>}, {transform_indices = @transform_3, window_bounds = array<i64: 256, 8>}]} {
    %c0 = arith.constant 0 : index
    %c0_0 = arith.constant 0 : index
    %0 = vector.load %arg1[%c0, %c0_0] : memref<256x72xbf16, #tpu.memory_space<vmem>>, vector<256x72xbf16>
    %c0_1 = arith.constant 0 : index
    %c0_2 = arith.constant 0 : index
    %1 = vector.load %arg2[%c0_1, %c0_2] : memref<72x8xbf16, #tpu.memory_space<vmem>>, vector<72x8xbf16>
    %cst = arith.constant dense<0.000000e+00> : vector<256x8xf32>
    %2 = tpu.matmul %0, %1, %cst {dimension_numbers = #tpu.dot_dimension_numbers<[1], [0], [0], [1], [0, 0, 1, 1], [], []>} : vector<256x72xbf16>, vector<72x8xbf16>, vector<256x8xf32> -> vector<256x8xf32>
    %c0_3 = arith.constant 0 : index
    %c0_4 = arith.constant 0 : index
    %3 = vector.load %arg3[%c0_3, %c0_4] : memref<1x8xf32, #tpu.memory_space<vmem>>, vector<1x8xf32>
    %4 = vector.broadcast %3 : vector<1x8xf32> to vector<256x8xf32>
    %5 = arith.addf %2, %4 : vector<256x8xf32>
    %6 = arith.truncf %5 : vector<256x8xf32> to vector<256x8xbf16>
    %c0_5 = arith.constant 0 : index
    %c0_6 = arith.constant 0 : index
    %7 = vector.load %arg4[%c0_5, %c0_6] : memref<256x8xbf16, #tpu.memory_space<vmem>>, vector<256x8xbf16>
    tpu.vector_store %arg4[%c0_5, %c0_6], %6 {strides = array<i32>} : memref<256x8xbf16, #tpu.memory_space<vmem>>, vector<256x8xbf16>,
    return
  }
  func.func @transform_0(%arg0: i32) -> (i32, i32) {
    %c0_i32 = arith.constant 0 : i32
    %c0_i32_0 = arith.constant 0 : i32
    return %arg0, %c0_i32 : i32, i32
  }
  func.func @transform_1(%arg0: i32) -> (i32, i32) {
    %c0_i32 = arith.constant 0 : i32
    %c0_i32_0 = arith.constant 0 : i32
    %c0_i32_1 = arith.constant 0 : i32
    return %c0_i32, %c0_i32_0 : i32, i32
  }
  func.func @transform_2(%arg0: i32) -> (i32, i32) {
    %c0_i32 = arith.constant 0 : i32
    %c0_i32_0 = arith.constant 0 : i32
    %c0_i32_1 = arith.constant 0 : i32
    return %c0_i32, %c0_i32_0 : i32, i32
  }
  func.func @transform_3(%arg0: i32) -> (i32, i32) {
    %c0_i32 = arith.constant 0 : i32
    %c0_i32_0 = arith.constant 0 : i32
    return %arg0, %c0_i32 : i32, i32
  }
}

module attributes {stable_mosaic.version = 11 : i64} {
  func.func @_mm_bias_add_relu_kernel(%arg0: i32, %arg1: memref<256x288xbf16, #tpu.memory_space<vmem>>, %arg2: memref<288x8xbf16, #tpu.memory_space<vmem>>, %arg3: memref<1x8xf32, #tpu.memory_space<vmem>>, %arg4: memref<256x8xbf16, #tpu.memory_space<vmem>>, %arg5: memref<256x8xf32, #tpu.memory_space<vmem>>) attributes {dimension_semantics = [#tpu.dimension_semantics<parallel>], iteration_bounds = array<i64: 2>, scalar_prefetch = 0 : i64, scratch_operands = 0 : i64, tpu.core_type = #tpu.core_type<tc>, window_params = [{transform_indices = @transform_0, window_bounds = array<i64: 256, 288>}, {pipeline_mode = #tpu.pipeline_mode<synchronous>, transform_indices = @transform_1, window_bounds = array<i64: 288, 8>}, {pipeline_mode = #tpu.pipeline_mode<synchronous>, transform_indices = @transform_2, window_bounds = array<i64: 1, 8>}, {transform_indices = @transform_3, window_bounds = array<i64: 256, 8>}, {transform_indices = @transform_4, window_bounds = array<i64: 256, 8>}]} {
    %c0 = arith.constant 0 : index
    %c0_0 = arith.constant 0 : index
    %0 = vector.load %arg1[%c0, %c0_0] : memref<256x288xbf16, #tpu.memory_space<vmem>>, vector<256x288xbf16>
    %c0_1 = arith.constant 0 : index
    %c0_2 = arith.constant 0 : index
    %1 = vector.load %arg2[%c0_1, %c0_2] : memref<288x8xbf16, #tpu.memory_space<vmem>>, vector<288x8xbf16>
    %cst = arith.constant dense<0.000000e+00> : vector<256x8xf32>
    %2 = tpu.matmul %0, %1, %cst {dimension_numbers = #tpu.dot_dimension_numbers<[1], [0], [0], [1], [0, 0, 1, 1], [], []>} : vector<256x288xbf16>, vector<288x8xbf16>, vector<256x8xf32> -> vector<256x8xf32>
    %c0_3 = arith.constant 0 : index
    %c0_4 = arith.constant 0 : index
    %3 = vector.load %arg3[%c0_3, %c0_4] : memref<1x8xf32, #tpu.memory_space<vmem>>, vector<1x8xf32>
    %4 = vector.broadcast %3 : vector<1x8xf32> to vector<256x8xf32>
    %5 = arith.addf %2, %4 : vector<256x8xf32>
    %c0_5 = arith.constant 0 : index
    %c0_6 = arith.constant 0 : index
    %6 = vector.load %arg4[%c0_5, %c0_6] : memref<256x8xbf16, #tpu.memory_space<vmem>>, vector<256x8xbf16>
    %7 = arith.extf %6 : vector<256x8xbf16> to vector<256x8xf32>
    %8 = arith.addf %5, %7 : vector<256x8xf32>
    %cst_7 = arith.constant 0.000000e+00 : f32
    %9 = vector.broadcast %cst_7 : f32 to vector<256x8xf32>
    %10 = arith.maximumf %8, %9 : vector<256x8xf32>
    %c0_8 = arith.constant 0 : index
    %c0_9 = arith.constant 0 : index
    %11 = vector.load %arg5[%c0_8, %c0_9] : memref<256x8xf32, #tpu.memory_space<vmem>>, vector<256x8xf32>
    tpu.vector_store %arg5[%c0_8, %c0_9], %10 {strides = array<i32>} : memref<256x8xf32, #tpu.memory_space<vmem>>, vector<256x8xf32>,
    return
  }
  func.func @transform_0(%arg0: i32) -> (i32, i32) {
    %c0_i32 = arith.constant 0 : i32
    %c0_i32_0 = arith.constant 0 : i32
    return %arg0, %c0_i32 : i32, i32
  }
  func.func @transform_1(%arg0: i32) -> (i32, i32) {
    %c0_i32 = arith.constant 0 : i32
    %c0_i32_0 = arith.constant 0 : i32
    %c0_i32_1 = arith.constant 0 : i32
    return %c0_i32, %c0_i32_0 : i32, i32
  }
  func.func @transform_2(%arg0: i32) -> (i32, i32) {
    %c0_i32 = arith.constant 0 : i32
    %c0_i32_0 = arith.constant 0 : i32
    %c0_i32_1 = arith.constant 0 : i32
    return %c0_i32, %c0_i32_0 : i32, i32
  }
  func.func @transform_3(%arg0: i32) -> (i32, i32) {
    %c0_i32 = arith.constant 0 : i32
    %c0_i32_0 = arith.constant 0 : i32
    return %arg0, %c0_i32 : i32, i32
  }
  func.func @transform_4(%arg0: i32) -> (i32, i32) {
    %c0_i32 = arith.constant 0 : i32
    %c0_i32_0 = arith.constant 0 : i32
    return %arg0, %c0_i32 : i32, i32
  }
}

</mosaic_0001>

<llo_original>
// kernel: cdc1_forward.5
$region0: #{cdc1_forward.5}
  #allocation0 [shape = 'u32[]', space=smem, size = 0x4, offset = 0x4, fixed_abs, tag = 'smem constant byte address 0x4 - core index']
  #allocation1 [shape = 'u32[72,128]{1,0:T(1,128)}', space=vmem, size = 0x9000, scoped, tag = 'internal scratch']
  %s0 = inlined_call_operand.vmem [shape: bf16[512,8], index: 0, kind: input, shape index: {}]
  %s1 = inlined_call_operand.vmem [shape: bf16[8,24], index: 1, kind: input, shape index: {}]
  %s2 = inlined_call_operand.vmem [shape: f32[1,24], index: 2, kind: input, shape index: {}]
  %s3 = inlined_call_operand.vmem [shape: bf16[512,24], index: 3, kind: output, shape index: {}]
  %s4 = sld [smem:[#allocation0]]
  $region45: #{cdc1_forward.5} parent=0
    _
  %s6 = ssub.s32 1, %s4
  %s7 = scalar_select 0, %s6, %s4
  loop: start=0, step=1, limit=4
  $region2: #{cdc1_forward.5} parent=0 // loop_pre_header
    _
  $region3: #{cdc1_forward.5} parent=0 // loop_header
    %s9 = sphi 0, %s13
    %p10 = scmp.ge.s32.totalorder %s9, 4
    %s19 = sphi 0, %s21
    %s22 = sphi 0, %s19
    %s23 = sphi 0, %s22
    %s39 = sphi 0, %s23
    %s43 = sphi 0, %s43
    %s45 = sphi 0, %s43
    %s46 = sphi 0, %s45
    %s60 = sphi 0, %s46
    %s64 = sphi 0, %s64
    %s66 = sphi 0, %s64
    %s67 = sphi 0, %s66
    %s81 = sphi 0, %s67
    %s87 = sphi 0, %s89
    %s90 = sphi 0, %s87
    %s91 = sphi 0, %s90
    %s107 = sphi 0, %s91
  $region4: #{cdc1_forward.5} parent=0 // loop_header_branch
    %12 = sbr.rel (%p10) target = $region8
  $region5: #{cdc1_forward.5} parent=0 // loop_body
    %s14 = ssub.s32 %s9, 1
    %s15 = ssub.s32 %s9, 2
    %s16 = sadd.s32 %s9, 1
    %s17 = ssub.s32 %s9, %s16
    %p18 = scmp.eq.s32.totalorder %s17, 0
    %s20 = sadd.s32 %s19, 1
    %s21 = scalar_select %p18, %s19, %s20
    %p24 = pneg %p18
    %p25 = scmp.eq.s32.totalorder %s9, 1
    %p26 = por %p24, %p25
    %p27 = scmp.ne.s32.totalorder %s19, %s22
    %p28 = scmp.eq.s32.totalorder %s9, 0
    %p29 = por %p27, %p28
    %p30 = scmp.ne.s32.totalorder %s19, %s22
    %p31 = scmp.eq.s32.totalorder %s14, 1
    %p32 = por %p30, %p31
    %p33 = scmp.ne.s32.totalorder %s22, %s23
    %p34 = scmp.eq.s32.totalorder %s14, 0
    %p35 = por %p33, %p34
    %p36 = scmp.ne.s32.totalorder %s22, %s23
    %p37 = scmp.eq.s32.totalorder %s15, 1
    %p38 = por %p36, %p37
    %p40 = scmp.ne.s32.totalorder %s23, %s39
    %p41 = scmp.eq.s32.totalorder %s15, 0
    %p42 = por %p40, %p41
    %s44 = sadd.s32 %s43, 1
    %p47 = scmp.eq.s32.totalorder %s9, 1
    %p48 = scmp.ne.s32.totalorder %s43, %s45
    %p49 = scmp.eq.s32.totalorder %s9, 0
    %p50 = por %p48, %p49
    %p51 = scmp.ne.s32.totalorder %s43, %s45
    %p52 = scmp.eq.s32.totalorder %s14, 1
    %p53 = por %p51, %p52
    %p54 = scmp.ne.s32.totalorder %s45, %s46
    %p55 = scmp.eq.s32.totalorder %s14, 0
    %p56 = por %p54, %p55
    %p57 = scmp.ne.s32.totalorder %s45, %s46
    %p58 = scmp.eq.s32.totalorder %s15, 1
    %p59 = por %p57, %p58
    %p61 = scmp.ne.s32.totalorder %s46, %s60
    %p62 = scmp.eq.s32.totalorder %s15, 0
    %p63 = por %p61, %p62
    %s65 = sadd.s32 %s64, 1
    %p68 = scmp.eq.s32.totalorder %s9, 1
    %p69 = scmp.ne.s32.totalorder %s64, %s66
    %p70 = scmp.eq.s32.totalorder %s9, 0
    %p71 = por %p69, %p70
    %p72 = scmp.ne.s32.totalorder %s64, %s66
    %p73 = scmp.eq.s32.totalorder %s14, 1
    %p74 = por %p72, %p73
    %p75 = scmp.ne.s32.totalorder %s66, %s67
    %p76 = scmp.eq.s32.totalorder %s14, 0
    %p77 = por %p75, %p76
    %p78 = scmp.ne.s32.totalorder %s66, %s67
    %p79 = scmp.eq.s32.totalorder %s15, 1
    %p80 = por %p78, %p79
    %p82 = scmp.ne.s32.totalorder %s67, %s81
    %p83 = scmp.eq.s32.totalorder %s15, 0
    %p84 = por %p82, %p83
    %s85 = ssub.s32 %s9, %s16
    %p86 = scmp.eq.s32.totalorder %s85, 0
    %s88 = sadd.s32 %s87, 1
    %s89 = scalar_select %p86, %s87, %s88
    %p92 = pneg %p86
    %p93 = scmp.eq.s32.totalorder %s9, 1
    %p94 = por %p92, %p93
    %p95 = scmp.ne.s32.totalorder %s87, %s90
    %p96 = scmp.eq.s32.totalorder %s9, 0
    %p97 = por %p95, %p96
    %p98 = scmp.ne.s32.totalorder %s87, %s90
    %p99 = scmp.eq.s32.totalorder %s14, 1
    %p100 = por %p98, %p99
    %p101 = scmp.ne.s32.totalorder %s90, %s91
    %p102 = scmp.eq.s32.totalorder %s14, 0
    %p103 = por %p101, %p102
    %p104 = scmp.ne.s32.totalorder %s90, %s91
    %p105 = scmp.eq.s32.totalorder %s15, 1
    %p106 = por %p104, %p105
    %p108 = scmp.ne.s32.totalorder %s91, %s107
    %p109 = scmp.eq.s32.totalorder %s15, 0
    %p110 = por %p108, %p109
    %p111 = scmp.le.s32.totalorder 1, %s9
    %p112 = scmp.lt.s32.totalorder %s9, 3
    %p113 = pnand %p111, %p112
    %p114 = pneg %p113
    // Predicated region
    $region9: #{cdc1_forward.5} parent=5 // pred_check
      _
    $region10: #{cdc1_forward.5} parent=5 // pred_check_branch
      %116 = sbr.rel (%p113) target = $region12
    $region11: #{cdc1_forward.5} parent=5 // pred_region
      %s117 = ssub.s32 %s9, 1
      // Predicated region
      $region13: #{cdc1_forward.5} parent=11 // pred_check
        %p118 = pneg %p56
      $region14: #{cdc1_forward.5} parent=11 // pred_check_branch
        %120 = sbr.rel (%p118) target = $region16
      $region15: #{cdc1_forward.5} parent=11 // pred_region
        _
      $region16: #{cdc1_forward.5} parent=11 // pred_fallthru
        _
      // Predicated region
      $region17: #{cdc1_forward.5} parent=11 // pred_check
        %p121 = pneg %p77
      $region18: #{cdc1_forward.5} parent=11 // pred_check_branch
        %123 = sbr.rel (%p121) target = $region20
      $region19: #{cdc1_forward.5} parent=11 // pred_region
        _
      $region20: #{cdc1_forward.5} parent=11 // pred_fallthru
        _
    $region12: #{cdc1_forward.5} parent=5 // pred_fallthru
      _
    %p124 = scmp.lt.s32.totalorder %s9, 2
    // Predicated region
    $region21: #{cdc1_forward.5} parent=5 // pred_check
      %p125 = pneg %p124
    $region22: #{cdc1_forward.5} parent=5 // pred_check_branch
      %127 = sbr.rel (%p125) target = $region24
    $region23: #{cdc1_forward.5} parent=5 // pred_region
      // Predicated region
      $region25: #{cdc1_forward.5} parent=23 // pred_check
        %p128 = pneg %p29
      $region26: #{cdc1_forward.5} parent=23 // pred_check_branch
        %130 = sbr.rel (%p128) target = $region28
      $region27: #{cdc1_forward.5} parent=23 // pred_region
        %s131 = smul.u32 32, %s9
        %p132 = scmp.lt.s32.totalorder %s131, 63
        %s133 = scalar_select %p132, %s131, 63
        %s134 = smul.addr %s133, 4
        %s135 = scalar_lea.vmem %s0, %s134
        %s136 = smul.u32 32, %s9
      $region28: #{cdc1_forward.5} parent=23 // pred_fallthru
        _
    $region24: #{cdc1_forward.5} parent=5 // pred_fallthru
      _
    %p137 = scmp.le.s32.totalorder 1, %s9
    %p138 = scmp.lt.s32.totalorder %s9, 3
    %p139 = pnand %p137, %p138
    %p140 = pneg %p139
    // Predicated region
    $region29: #{cdc1_forward.5} parent=5 // pred_check
      _
    $region30: #{cdc1_forward.5} parent=5 // pred_check_branch
      %142 = sbr.rel (%p139) target = $region32
    $region31: #{cdc1_forward.5} parent=5 // pred_region
      %s143 = ssub.s32 %s9, 1
      %s144 = smul.u32 32, %s14
      %p145 = scmp.lt.s32.totalorder %s144, 63
      %s146 = scalar_select %p145, %s144, 63
      %s147 = smul.addr %s146, 4
      %s148 = scalar_lea.vmem %s0, %s147
      %p149 = pneg %p35
      %p150 = pneg %p32
      %p151 = pneg %p56
      %p152 = pneg %p53
      %p153 = pneg %p77
      %p154 = pneg %p74
      %p155 = pneg %p103
      %p156 = pneg %p100
      %s157 = smul.u32 32, %s14
      %p158 = scmp.lt.s32.totalorder %s157, 63
      %s159 = scalar_select %p158, %s157, 63
      %s160 = smul.addr %s159, 4
      %s161 = scalar_lea.vmem %s3, %s160
      %s162 = smul.u32 32, %s14
      %p163 = scmp.lt.s32.totalorder %s162, 63
      %s164 = scalar_select %p163, %s162, 63
      %s165 = smul.addr %s164, 4
      %s166 = scalar_lea.vmem %s0, %s165
      %s167 = smul.u32 32, %s14
      %s168 = smul.u32 32, %s14
      %p169 = scmp.lt.s32.totalorder %s168, 63
      %s170 = scalar_select %p169, %s168, 63
      %s171 = smul.addr %s170, 4
      %s172 = scalar_lea.vmem %s3, %s171
      %s173 = smul.u32 32, %s14
      %v175 = vld [vmem:[%s166] sm:$0xf]
      %v176 = vld [vmem:[%s166 + $0x4] sm:$0xf]
      %v177 = vld [vmem:[%s166 + $0x8] sm:$0xf]
      %v178 = vld [vmem:[%s166 + $0xc] sm:$0xf]
      %v179 = vld [vmem:[%s166 + $0x10] sm:$0xf]
      %v180 = vld [vmem:[%s166 + $0x14] sm:$0xf]
      %v181 = vld [vmem:[%s166 + $0x18] sm:$0xf]
      %v182 = vld [vmem:[%s166 + $0x1c] sm:$0xf]
      %v183 = vld [vmem:[%s166 + $0x20] sm:$0xf]
      %v184 = vld [vmem:[%s166 + $0x24] sm:$0xf]
      %v185 = vld [vmem:[%s166 + $0x28] sm:$0xf]
      %v186 = vld [vmem:[%s166 + $0x2c] sm:$0xf]
      %v187 = vld [vmem:[%s166 + $0x30] sm:$0xf]
      %v188 = vld [vmem:[%s166 + $0x34] sm:$0xf]
      %v189 = vld [vmem:[%s166 + $0x38] sm:$0xf]
      %v190 = vld [vmem:[%s166 + $0x3c] sm:$0xf]
      %v191 = vld [vmem:[%s166 + $0x40] sm:$0xf]
      %v192 = vld [vmem:[%s166 + $0x44] sm:$0xf]
      %v193 = vld [vmem:[%s166 + $0x48] sm:$0xf]
      %v194 = vld [vmem:[%s166 + $0x4c] sm:$0xf]
      %v195 = vld [vmem:[%s166 + $0x50] sm:$0xf]
      %v196 = vld [vmem:[%s166 + $0x54] sm:$0xf]
      %v197 = vld [vmem:[%s166 + $0x58] sm:$0xf]
      %v198 = vld [vmem:[%s166 + $0x5c] sm:$0xf]
      %v199 = vld [vmem:[%s166 + $0x60] sm:$0xf]
      %v200 = vld [vmem:[%s166 + $0x64] sm:$0xf]
      %v201 = vld [vmem:[%s166 + $0x68] sm:$0xf]
      %v202 = vld [vmem:[%s166 + $0x6c] sm:$0xf]
      %v203 = vld [vmem:[%s166 + $0x70] sm:$0xf]
      %v204 = vld [vmem:[%s166 + $0x74] sm:$0xf]
      %v205 = vld [vmem:[%s166 + $0x78] sm:$0xf]
      %v206 = vld [vmem:[%s166 + $0x7c] sm:$0xf]
      %v207 = vld [vmem:[%s1] sm:$0xf]
      %v208 = vld [vmem:[%s2] sm:$0x1]
      %v210 = vperm.slane %v208, 0
      %v244 = vunpack.c.l.b16 %v175
      %v245 = vunpack.c.l.b16 %v176
      %v246 = vunpack.c.l.b16 %v177
      %v247 = vunpack.c.l.b16 %v178
      %v248 = vunpack.c.l.b16 %v179
      %v249 = vunpack.c.l.b16 %v180
      %v250 = vunpack.c.l.b16 %v181
      %v251 = vunpack.c.l.b16 %v182
      %v252 = vunpack.c.l.b16 %v183
      %v253 = vunpack.c.l.b16 %v184
      %v254 = vunpack.c.l.b16 %v185
      %v255 = vunpack.c.l.b16 %v186
      %v256 = vunpack.c.l.b16 %v187
      %v257 = vunpack.c.l.b16 %v188
      %v258 = vunpack.c.l.b16 %v189
      %v259 = vunpack.c.l.b16 %v190
      %v260 = vunpack.c.l.b16 %v191
      %v261 = vunpack.c.l.b16 %v192
      %v262 = vunpack.c.l.b16 %v193
      %v263 = vunpack.c.l.b16 %v194
      %v264 = vunpack.c.l.b16 %v195
      %v265 = vunpack.c.l.b16 %v196
      %v266 = vunpack.c.l.b16 %v197
      %v267 = vunpack.c.l.b16 %v198
      %v268 = vunpack.c.l.b16 %v199
      %v269 = vunpack.c.l.b16 %v200
      %v270 = vunpack.c.l.b16 %v201
      %v271 = vunpack.c.l.b16 %v202
      %v272 = vunpack.c.l.b16 %v203
      %v273 = vunpack.c.l.b16 %v204
      %v274 = vunpack.c.l.b16 %v205
      %v275 = vunpack.c.l.b16 %v206
      %v276 = vpack.c.b16 %v245, %v244
      %v277 = vpack.c.b16 %v247, %v246
      %v278 = vpack.c.b16 %v249, %v248
      %v279 = vpack.c.b16 %v251, %v250
      %v280 = vpack.c.b16 %v253, %v252
      %v281 = vpack.c.b16 %v255, %v254
      %v282 = vpack.c.b16 %v257, %v256
      %v283 = vpack.c.b16 %v259, %v258
      %v284 = vpack.c.b16 %v261, %v260
      %v285 = vpack.c.b16 %v263, %v262
      %v286 = vpack.c.b16 %v265, %v264
      %v287 = vpack.c.b16 %v267, %v266
      %v288 = vpack.c.b16 %v269, %v268
      %v289 = vpack.c.b16 %v271, %v270
      %v290 = vpack.c.b16 %v273, %v272
      %v291 = vpack.c.b16 %v275, %v274
      %vm292 = vcmask 64512
      %v294 = vsel %vm292, %v276, 0
      %v297 = vsel %vm292, %v277, 0
      %v300 = vsel %vm292, %v278, 0
      %v303 = vsel %vm292, %v279, 0
      %v306 = vsel %vm292, %v280, 0
      %v309 = vsel %vm292, %v281, 0
      %v312 = vsel %vm292, %v282, 0
      %v315 = vsel %vm292, %v283, 0
      %v318 = vsel %vm292, %v284, 0
      %v321 = vsel %vm292, %v285, 0
      %v324 = vsel %vm292, %v286, 0
      %v327 = vsel %vm292, %v287, 0
      %v330 = vsel %vm292, %v288, 0
      %v333 = vsel %vm292, %v289, 0
      %v336 = vsel %vm292, %v290, 0
      %v339 = vsel %vm292, %v291, 0
      %vm341 = vcmask 1043456
      %v343 = vsel %vm341, %v207, 0
      %345 = vmatpush.bf16.msra.mxu0 0
      %346 = vmatpush.bf16.msra.mxu0 0
      %347 = vmatpush.bf16.msra.mxu0 0
      %348 = vmatpush.bf16.msra.mxu0 0
      %349 = vmatpush.bf16.msra.mxu0 0
      %350 = vmatpush.bf16.msra.mxu0 0
      %351 = vmatpush.bf16.msra.mxu0 0
      %352 = vmatpush.bf16.msra.mxu0 %v343
      %353 = vmatmul.bf16.gmra.mxu0 %v294
      %v354 = vpop.f32.mrf.mxu0
      %v355 = vadd.f32 %v210, %v354
      %v356 = vpop.f32.mrf.mxu0
      %v357 = vadd.f32 %v210, %v356
      %358 = vmatmul.bf16.gmra.mxu0 %v297
      %v359 = vpop.f32.mrf.mxu0
      %v360 = vadd.f32 %v210, %v359
      %v361 = vpop.f32.mrf.mxu0
      %v362 = vadd.f32 %v210, %v361
      %363 = vmatmul.bf16.gmra.mxu0 %v300
      %v364 = vpop.f32.mrf.mxu0
      %v365 = vadd.f32 %v210, %v364
      %v366 = vpop.f32.mrf.mxu0
      %v367 = vadd.f32 %v210, %v366
      %368 = vmatmul.bf16.gmra.mxu0 %v303
      %v369 = vpop.f32.mrf.mxu0
      %v370 = vadd.f32 %v210, %v369
      %v371 = vpop.f32.mrf.mxu0
      %v372 = vadd.f32 %v210, %v371
      %373 = vmatmul.bf16.gmra.mxu0 %v306
      %v374 = vpop.f32.mrf.mxu0
      %v375 = vadd.f32 %v210, %v374
      %v376 = vpop.f32.mrf.mxu0
      %v377 = vadd.f32 %v210, %v376
      %378 = vmatmul.bf16.gmra.mxu0 %v309
      %v379 = vpop.f32.mrf.mxu0
      %v380 = vadd.f32 %v210, %v379
      %v381 = vpop.f32.mrf.mxu0
      %v382 = vadd.f32 %v210, %v381
      %383 = vmatmul.bf16.gmra.mxu0 %v312
      %v384 = vpop.f32.mrf.mxu0
      %v385 = vadd.f32 %v210, %v384
      %v386 = vpop.f32.mrf.mxu0
      %v387 = vadd.f32 %v210, %v386
      %388 = vmatmul.bf16.gmra.mxu0 %v315
      %v389 = vpop.f32.mrf.mxu0
      %v390 = vadd.f32 %v210, %v389
      %v391 = vpop.f32.mrf.mxu0
      %v392 = vadd.f32 %v210, %v391
      %393 = vmatmul.bf16.gmra.mxu0 %v318
      %v394 = vpop.f32.mrf.mxu0
      %v395 = vadd.f32 %v210, %v394
      %v396 = vpop.f32.mrf.mxu0
      %v397 = vadd.f32 %v210, %v396
      %398 = vmatmul.bf16.gmra.mxu0 %v321
      %v399 = vpop.f32.mrf.mxu0
      %v400 = vadd.f32 %v210, %v399
      %v401 = vpop.f32.mrf.mxu0
      %v402 = vadd.f32 %v210, %v401
      %403 = vmatmul.bf16.gmra.mxu0 %v324
      %v404 = vpop.f32.mrf.mxu0
      %v405 = vadd.f32 %v210, %v404
      %v406 = vpop.f32.mrf.mxu0
      %v407 = vadd.f32 %v210, %v406
      %408 = vmatmul.bf16.gmra.mxu0 %v327
      %v409 = vpop.f32.mrf.mxu0
      %v410 = vadd.f32 %v210, %v409
      %v411 = vpop.f32.mrf.mxu0
      %v412 = vadd.f32 %v210, %v411
      %413 = vmatmul.bf16.gmra.mxu0 %v330
      %v414 = vpop.f32.mrf.mxu0
      %v415 = vadd.f32 %v210, %v414
      %v416 = vpop.f32.mrf.mxu0
      %v417 = vadd.f32 %v210, %v416
      %418 = vmatmul.bf16.gmra.mxu0 %v333
      %v419 = vpop.f32.mrf.mxu0
      %v420 = vadd.f32 %v210, %v419
      %v421 = vpop.f32.mrf.mxu0
      %v422 = vadd.f32 %v210, %v421
      %423 = vmatmul.bf16.gmra.mxu0 %v336
      %v424 = vpop.f32.mrf.mxu0
      %v425 = vadd.f32 %v210, %v424
      %v426 = vpop.f32.mrf.mxu0
      %v427 = vadd.f32 %v210, %v426
      %428 = vmatmul.bf16.gmra.mxu0 %v339
      %v429 = vpop.f32.mrf.mxu0
      %v430 = vadd.f32 %v210, %v429
      %v431 = vpop.f32.mrf.mxu0
      %v432 = vadd.f32 %v210, %v431
      %433 = vdwg.mxu0
      %v434 = vpack.c.bf16 %v355, %v355
      %v435 = vpack.c.bf16 %v357, %v357
      %v436 = vpack.c.bf16 %v360, %v360
      %v437 = vpack.c.bf16 %v362, %v362
      %v438 = vpack.c.bf16 %v365, %v365
      %v439 = vpack.c.bf16 %v367, %v367
      %v440 = vpack.c.bf16 %v370, %v370
      %v441 = vpack.c.bf16 %v372, %v372
      %v442 = vpack.c.bf16 %v375, %v375
      %v443 = vpack.c.bf16 %v377, %v377
      %v444 = vpack.c.bf16 %v380, %v380
      %v445 = vpack.c.bf16 %v382, %v382
      %v446 = vpack.c.bf16 %v385, %v385
      %v447 = vpack.c.bf16 %v387, %v387
      %v448 = vpack.c.bf16 %v390, %v390
      %v449 = vpack.c.bf16 %v392, %v392
      %v450 = vpack.c.bf16 %v395, %v395
      %v451 = vpack.c.bf16 %v397, %v397
      %v452 = vpack.c.bf16 %v400, %v400
      %v453 = vpack.c.bf16 %v402, %v402
      %v454 = vpack.c.bf16 %v405, %v405
      %v455 = vpack.c.bf16 %v407, %v407
      %v456 = vpack.c.bf16 %v410, %v410
      %v457 = vpack.c.bf16 %v412, %v412
      %v458 = vpack.c.bf16 %v415, %v415
      %v459 = vpack.c.bf16 %v417, %v417
      %v460 = vpack.c.bf16 %v420, %v420
      %v461 = vpack.c.bf16 %v422, %v422
      %v462 = vpack.c.bf16 %v425, %v425
      %v463 = vpack.c.bf16 %v427, %v427
      %v464 = vpack.c.bf16 %v430, %v430
      %v465 = vpack.c.bf16 %v432, %v432
      %vm466 = vcmask 191488
      %467 = vst.msk [vmem:[%s172] sm:$0xf] %vm466, %v434
      %468 = vst.msk [vmem:[%s172 + $0x4] sm:$0xf] %vm466, %v435
      %469 = vst.msk [vmem:[%s172 + $0x8] sm:$0xf] %vm466, %v436
      %470 = vst.msk [vmem:[%s172 + $0xc] sm:$0xf] %vm466, %v437
      %471 = vst.msk [vmem:[%s172 + $0x10] sm:$0xf] %vm466, %v438
      %472 = vst.msk [vmem:[%s172 + $0x14] sm:$0xf] %vm466, %v439
      %473 = vst.msk [vmem:[%s172 + $0x18] sm:$0xf] %vm466, %v440
      %474 = vst.msk [vmem:[%s172 + $0x1c] sm:$0xf] %vm466, %v441
      %475 = vst.msk [vmem:[%s172 + $0x20] sm:$0xf] %vm466, %v442
      %476 = vst.msk [vmem:[%s172 + $0x24] sm:$0xf] %vm466, %v443
      %477 = vst.msk [vmem:[%s172 + $0x28] sm:$0xf] %vm466, %v444
      %478 = vst.msk [vmem:[%s172 + $0x2c] sm:$0xf] %vm466, %v445
      %479 = vst.msk [vmem:[%s172 + $0x30] sm:$0xf] %vm466, %v446
      %480 = vst.msk [vmem:[%s172 + $0x34] sm:$0xf] %vm466, %v447
      %481 = vst.msk [vmem:[%s172 + $0x38] sm:$0xf] %vm466, %v448
      %482 = vst.msk [vmem:[%s172 + $0x3c] sm:$0xf] %vm466, %v449
      %483 = vst.msk [vmem:[%s172 + $0x40] sm:$0xf] %vm466, %v450
      %484 = vst.msk [vmem:[%s172 + $0x44] sm:$0xf] %vm466, %v451
      %485 = vst.msk [vmem:[%s172 + $0x48] sm:$0xf] %vm466, %v452
      %486 = vst.msk [vmem:[%s172 + $0x4c] sm:$0xf] %vm466, %v453
      %487 = vst.msk [vmem:[%s172 + $0x50] sm:$0xf] %vm466, %v454
      %488 = vst.msk [vmem:[%s172 + $0x54] sm:$0xf] %vm466, %v455
      %489 = vst.msk [vmem:[%s172 + $0x58] sm:$0xf] %vm466, %v456
      %490 = vst.msk [vmem:[%s172 + $0x5c] sm:$0xf] %vm466, %v457
      %491 = vst.msk [vmem:[%s172 + $0x60] sm:$0xf] %vm466, %v458
      %492 = vst.msk [vmem:[%s172 + $0x64] sm:$0xf] %vm466, %v459
      %493 = vst.msk [vmem:[%s172 + $0x68] sm:$0xf] %vm466, %v460
      %494 = vst.msk [vmem:[%s172 + $0x6c] sm:$0xf] %vm466, %v461
      %495 = vst.msk [vmem:[%s172 + $0x70] sm:$0xf] %vm466, %v462
      %496 = vst.msk [vmem:[%s172 + $0x74] sm:$0xf] %vm466, %v463
      %497 = vst.msk [vmem:[%s172 + $0x78] sm:$0xf] %vm466, %v464
      %498 = vst.msk [vmem:[%s172 + $0x7c] sm:$0xf] %vm466, %v465
      %s499 = smul.u32 32, %s14
      %p500 = scmp.lt.s32.totalorder %s499, 63
      %s501 = scalar_select %p500, %s499, 63
      %s502 = smul.addr %s501, 4
      %s503 = scalar_lea.vmem %s3, %s502
      // Predicated region
      $region33: #{cdc1_forward.5} parent=31 // pred_check
        %p504 = pneg %p100
      $region34: #{cdc1_forward.5} parent=31 // pred_check_branch
        %506 = sbr.rel (%p504) target = $region36
      $region35: #{cdc1_forward.5} parent=31 // pred_region
        %s507 = smul.u32 32, %s14
      $region36: #{cdc1_forward.5} parent=31 // pred_fallthru
        _
    $region32: #{cdc1_forward.5} parent=5 // pred_fallthru
      _
    %p508 = scmp.le.s32.totalorder 2, %s9
    // Predicated region
    $region37: #{cdc1_forward.5} parent=5 // pred_check
      %p509 = pneg %p508
    $region38: #{cdc1_forward.5} parent=5 // pred_check_branch
      %511 = sbr.rel (%p509) target = $region40
    $region39: #{cdc1_forward.5} parent=5 // pred_region
      %s512 = ssub.s32 %s9, 2
      // Predicated region
      $region41: #{cdc1_forward.5} parent=39 // pred_check
        %p513 = pneg %p106
      $region42: #{cdc1_forward.5} parent=39 // pred_check_branch
        %515 = sbr.rel (%p513) target = $region44
      $region43: #{cdc1_forward.5} parent=39 // pred_region
        %s516 = smul.u32 32, %s15
        %p517 = scmp.lt.s32.totalorder %s516, 63
        %s518 = scalar_select %p517, %s516, 63
        %s519 = smul.addr %s518, 4
        %s520 = scalar_lea.vmem %s3, %s519
      $region44: #{cdc1_forward.5} parent=39 // pred_fallthru
        _
    $region40: #{cdc1_forward.5} parent=5 // pred_fallthru
      _
  $region6: #{cdc1_forward.5} parent=0 // loop_footer
    %s13 = sadd.s32 1, %s9
  $region7: #{cdc1_forward.5} parent=0 // loop_footer_branch
    %8 = sbr.rel target = $region3
  $region8: #{cdc1_forward.5} parent=0 // loop_exit
    _

// kernel: cdc1_forward.6
$region0: #{cdc1_forward.6}
  #allocation0 [shape = 'u32[]', space=smem, size = 0x4, offset = 0x4, fixed_abs, tag = 'smem constant byte address 0x4 - core index']
  #allocation1 [shape = 'u32[72,128]{1,0:T(1,128)}', space=vmem, size = 0x9000, scoped, tag = 'internal scratch']
  %s0 = inlined_call_operand.vmem [shape: bf16[512,72], index: 0, kind: input, shape index: {}]
  %s1 = inlined_call_operand.vmem [shape: bf16[72,16], index: 1, kind: input, shape index: {}]
  %s2 = inlined_call_operand.vmem [shape: f32[1,16], index: 2, kind: input, shape index: {}]
  %s3 = inlined_call_operand.vmem [shape: bf16[512,16], index: 3, kind: output, shape index: {}]
  %s4 = sld [smem:[#allocation0]]
  $region45: #{cdc1_forward.6} parent=0
    _
  %s6 = ssub.s32 1, %s4
  %s7 = scalar_select 0, %s6, %s4
  loop: start=0, step=1, limit=4
  $region2: #{cdc1_forward.6} parent=0 // loop_pre_header
    _
  $region3: #{cdc1_forward.6} parent=0 // loop_header
    %s9 = sphi 0, %s13
    %p10 = scmp.ge.s32.totalorder %s9, 4
    %s19 = sphi 0, %s21
    %s22 = sphi 0, %s19
    %s23 = sphi 0, %s22
    %s39 = sphi 0, %s23
    %s43 = sphi 0, %s43
    %s45 = sphi 0, %s43
    %s46 = sphi 0, %s45
    %s60 = sphi 0, %s46
    %s64 = sphi 0, %s64
    %s66 = sphi 0, %s64
    %s67 = sphi 0, %s66
    %s81 = sphi 0, %s67
    %s87 = sphi 0, %s89
    %s90 = sphi 0, %s87
    %s91 = sphi 0, %s90
    %s107 = sphi 0, %s91
  $region4: #{cdc1_forward.6} parent=0 // loop_header_branch
    %12 = sbr.rel (%p10) target = $region8
  $region5: #{cdc1_forward.6} parent=0 // loop_body
    %s14 = ssub.s32 %s9, 1
    %s15 = ssub.s32 %s9, 2
    %s16 = sadd.s32 %s9, 1
    %s17 = ssub.s32 %s9, %s16
    %p18 = scmp.eq.s32.totalorder %s17, 0
    %s20 = sadd.s32 %s19, 1
    %s21 = scalar_select %p18, %s19, %s20
    %p24 = pneg %p18
    %p25 = scmp.eq.s32.totalorder %s9, 1
    %p26 = por %p24, %p25
    %p27 = scmp.ne.s32.totalorder %s19, %s22
    %p28 = scmp.eq.s32.totalorder %s9, 0
    %p29 = por %p27, %p28
    %p30 = scmp.ne.s32.totalorder %s19, %s22
    %p31 = scmp.eq.s32.totalorder %s14, 1
    %p32 = por %p30, %p31
    %p33 = scmp.ne.s32.totalorder %s22, %s23
    %p34 = scmp.eq.s32.totalorder %s14, 0
    %p35 = por %p33, %p34
    %p36 = scmp.ne.s32.totalorder %s22, %s23
    %p37 = scmp.eq.s32.totalorder %s15, 1
    %p38 = por %p36, %p37
    %p40 = scmp.ne.s32.totalorder %s23, %s39
    %p41 = scmp.eq.s32.totalorder %s15, 0
    %p42 = por %p40, %p41
    %s44 = sadd.s32 %s43, 1
    %p47 = scmp.eq.s32.totalorder %s9, 1
    %p48 = scmp.ne.s32.totalorder %s43, %s45
    %p49 = scmp.eq.s32.totalorder %s9, 0
    %p50 = por %p48, %p49
    %p51 = scmp.ne.s32.totalorder %s43, %s45
    %p52 = scmp.eq.s32.totalorder %s14, 1
    %p53 = por %p51, %p52
    %p54 = scmp.ne.s32.totalorder %s45, %s46
    %p55 = scmp.eq.s32.totalorder %s14, 0
    %p56 = por %p54, %p55
    %p57 = scmp.ne.s32.totalorder %s45, %s46
    %p58 = scmp.eq.s32.totalorder %s15, 1
    %p59 = por %p57, %p58
    %p61 = scmp.ne.s32.totalorder %s46, %s60
    %p62 = scmp.eq.s32.totalorder %s15, 0
    %p63 = por %p61, %p62
    %s65 = sadd.s32 %s64, 1
    %p68 = scmp.eq.s32.totalorder %s9, 1
    %p69 = scmp.ne.s32.totalorder %s64, %s66
    %p70 = scmp.eq.s32.totalorder %s9, 0
    %p71 = por %p69, %p70
    %p72 = scmp.ne.s32.totalorder %s64, %s66
    %p73 = scmp.eq.s32.totalorder %s14, 1
    %p74 = por %p72, %p73
    %p75 = scmp.ne.s32.totalorder %s66, %s67
    %p76 = scmp.eq.s32.totalorder %s14, 0
    %p77 = por %p75, %p76
    %p78 = scmp.ne.s32.totalorder %s66, %s67
    %p79 = scmp.eq.s32.totalorder %s15, 1
    %p80 = por %p78, %p79
    %p82 = scmp.ne.s32.totalorder %s67, %s81
    %p83 = scmp.eq.s32.totalorder %s15, 0
    %p84 = por %p82, %p83
    %s85 = ssub.s32 %s9, %s16
    %p86 = scmp.eq.s32.totalorder %s85, 0
    %s88 = sadd.s32 %s87, 1
    %s89 = scalar_select %p86, %s87, %s88
    %p92 = pneg %p86
    %p93 = scmp.eq.s32.totalorder %s9, 1
    %p94 = por %p92, %p93
    %p95 = scmp.ne.s32.totalorder %s87, %s90
    %p96 = scmp.eq.s32.totalorder %s9, 0
    %p97 = por %p95, %p96
    %p98 = scmp.ne.s32.totalorder %s87, %s90
    %p99 = scmp.eq.s32.totalorder %s14, 1
    %p100 = por %p98, %p99
    %p101 = scmp.ne.s32.totalorder %s90, %s91
    %p102 = scmp.eq.s32.totalorder %s14, 0
    %p103 = por %p101, %p102
    %p104 = scmp.ne.s32.totalorder %s90, %s91
    %p105 = scmp.eq.s32.totalorder %s15, 1
    %p106 = por %p104, %p105
    %p108 = scmp.ne.s32.totalorder %s91, %s107
    %p109 = scmp.eq.s32.totalorder %s15, 0
    %p110 = por %p108, %p109
    %p111 = scmp.le.s32.totalorder 1, %s9
    %p112 = scmp.lt.s32.totalorder %s9, 3
    %p113 = pnand %p111, %p112
    %p114 = pneg %p113
    // Predicated region
    $region9: #{cdc1_forward.6} parent=5 // pred_check
      _
    $region10: #{cdc1_forward.6} parent=5 // pred_check_branch
      %116 = sbr.rel (%p113) target = $region12
    $region11: #{cdc1_forward.6} parent=5 // pred_region
      %s117 = ssub.s32 %s9, 1
      // Predicated region
      $region13: #{cdc1_forward.6} parent=11 // pred_check
        %p118 = pneg %p56
      $region14: #{cdc1_forward.6} parent=11 // pred_check_branch
        %120 = sbr.rel (%p118) target = $region16
      $region15: #{cdc1_forward.6} parent=11 // pred_region
        _
      $region16: #{cdc1_forward.6} parent=11 // pred_fallthru
        _
      // Predicated region
      $region17: #{cdc1_forward.6} parent=11 // pred_check
        %p121 = pneg %p77
      $region18: #{cdc1_forward.6} parent=11 // pred_check_branch
        %123 = sbr.rel (%p121) target = $region20
      $region19: #{cdc1_forward.6} parent=11 // pred_region
        _
      $region20: #{cdc1_forward.6} parent=11 // pred_fallthru
        _
    $region12: #{cdc1_forward.6} parent=5 // pred_fallthru
      _
    %p124 = scmp.lt.s32.totalorder %s9, 2
    // Predicated region
    $region21: #{cdc1_forward.6} parent=5 // pred_check
      %p125 = pneg %p124
    $region22: #{cdc1_forward.6} parent=5 // pred_check_branch
      %127 = sbr.rel (%p125) target = $region24
    $region23: #{cdc1_forward.6} parent=5 // pred_region
      // Predicated region
      $region25: #{cdc1_forward.6} parent=23 // pred_check
        %p128 = pneg %p29
      $region26: #{cdc1_forward.6} parent=23 // pred_check_branch
        %130 = sbr.rel (%p128) target = $region28
      $region27: #{cdc1_forward.6} parent=23 // pred_region
        %s131 = smul.u32 32, %s9
        %p132 = scmp.lt.s32.totalorder %s131, 63
        %s133 = scalar_select %p132, %s131, 63
        %s134 = smul.addr %s133, 4
        %s135 = scalar_lea.vmem %s0, %s134
        %s136 = smul.u32 32, %s9
      $region28: #{cdc1_forward.6} parent=23 // pred_fallthru
        _
    $region24: #{cdc1_forward.6} parent=5 // pred_fallthru
      _
    %p137 = scmp.le.s32.totalorder 1, %s9
    %p138 = scmp.lt.s32.totalorder %s9, 3
    %p139 = pnand %p137, %p138
    %p140 = pneg %p139
    // Predicated region
    $region29: #{cdc1_forward.6} parent=5 // pred_check
      _
    $region30: #{cdc1_forward.6} parent=5 // pred_check_branch
      %142 = sbr.rel (%p139) target = $region32
    $region31: #{cdc1_forward.6} parent=5 // pred_region
      %s143 = ssub.s32 %s9, 1
      %s144 = smul.u32 32, %s14
      %p145 = scmp.lt.s32.totalorder %s144, 63
      %s146 = scalar_select %p145, %s144, 63
      %s147 = smul.addr %s146, 4
      %s148 = scalar_lea.vmem %s0, %s147
      %p149 = pneg %p35
      %p150 = pneg %p32
      %p151 = pneg %p56
      %p152 = pneg %p53
      %p153 = pneg %p77
      %p154 = pneg %p74
      %p155 = pneg %p103
      %p156 = pneg %p100
      %s157 = smul.u32 32, %s14
      %p158 = scmp.lt.s32.totalorder %s157, 63
      %s159 = scalar_select %p158, %s157, 63
      %s160 = smul.addr %s159, 4
      %s161 = scalar_lea.vmem %s3, %s160
      %s162 = smul.u32 32, %s14
      %p163 = scmp.lt.s32.totalorder %s162, 63
      %s164 = scalar_select %p163, %s162, 63
      %s165 = smul.addr %s164, 4
      %s166 = scalar_lea.vmem %s0, %s165
      %s167 = smul.u32 32, %s14
      %s168 = smul.u32 32, %s14
      %p169 = scmp.lt.s32.totalorder %s168, 63
      %s170 = scalar_select %p169, %s168, 63
      %s171 = smul.addr %s170, 4
      %s172 = scalar_lea.vmem %s3, %s171
      %s173 = smul.u32 32, %s14
      %v175 = vld [vmem:[%s166] sm:$0xf]
      %v176 = vld [vmem:[%s166 + $0x4] sm:$0xf]
      %v177 = vld [vmem:[%s166 + $0x8] sm:$0xf]
      %v178 = vld [vmem:[%s166 + $0xc] sm:$0xf]
      %v179 = vld [vmem:[%s166 + $0x10] sm:$0xf]
      %v180 = vld [vmem:[%s166 + $0x14] sm:$0xf]
      %v181 = vld [vmem:[%s166 + $0x18] sm:$0xf]
      %v182 = vld [vmem:[%s166 + $0x1c] sm:$0xf]
      %v183 = vld [vmem:[%s166 + $0x20] sm:$0xf]
      %v184 = vld [vmem:[%s166 + $0x24] sm:$0xf]
      %v185 = vld [vmem:[%s166 + $0x28] sm:$0xf]
      %v186 = vld [vmem:[%s166 + $0x2c] sm:$0xf]
      %v187 = vld [vmem:[%s166 + $0x30] sm:$0xf]
      %v188 = vld [vmem:[%s166 + $0x34] sm:$0xf]
      %v189 = vld [vmem:[%s166 + $0x38] sm:$0xf]
      %v190 = vld [vmem:[%s166 + $0x3c] sm:$0xf]
      %v191 = vld [vmem:[%s166 + $0x40] sm:$0xf]
      %v192 = vld [vmem:[%s166 + $0x44] sm:$0xf]
      %v193 = vld [vmem:[%s166 + $0x48] sm:$0xf]
      %v194 = vld [vmem:[%s166 + $0x4c] sm:$0xf]
      %v195 = vld [vmem:[%s166 + $0x50] sm:$0xf]
      %v196 = vld [vmem:[%s166 + $0x54] sm:$0xf]
      %v197 = vld [vmem:[%s166 + $0x58] sm:$0xf]
      %v198 = vld [vmem:[%s166 + $0x5c] sm:$0xf]
      %v199 = vld [vmem:[%s166 + $0x60] sm:$0xf]
      %v200 = vld [vmem:[%s166 + $0x64] sm:$0xf]
      %v201 = vld [vmem:[%s166 + $0x68] sm:$0xf]
      %v202 = vld [vmem:[%s166 + $0x6c] sm:$0xf]
      %v203 = vld [vmem:[%s166 + $0x70] sm:$0xf]
      %v204 = vld [vmem:[%s166 + $0x74] sm:$0xf]
      %v205 = vld [vmem:[%s166 + $0x78] sm:$0xf]
      %v206 = vld [vmem:[%s166 + $0x7c] sm:$0xf]
      %v207 = vld [vmem:[%s1] sm:$0xf]
      %v208 = vld [vmem:[%s1 + $0x4] sm:$0xf]
      %v209 = vld [vmem:[%s1 + $0x8] sm:$0xf]
      %v210 = vld [vmem:[%s1 + $0xc] sm:$0xf]
      %v211 = vld [vmem:[%s1 + $0x10] sm:$0xf]
      %v212 = vld [vmem:[%s1 + $0x14] sm:$0xf]
      %v213 = vld [vmem:[%s1 + $0x18] sm:$0xf]
      %v214 = vld [vmem:[%s1 + $0x1c] sm:$0xf]
      %v215 = vld [vmem:[%s1 + $0x20] sm:$0xf]
      %v216 = vld [vmem:[%s2] sm:$0x1]
      %v218 = vperm.slane %v216, 0
      %v252 = vunpack.c.l.b16 %v175
      %v253 = vunpack.c.l.b16 %v176
      %v254 = vunpack.c.l.b16 %v177
      %v255 = vunpack.c.l.b16 %v178
      %v256 = vunpack.c.l.b16 %v179
      %v257 = vunpack.c.l.b16 %v180
      %v258 = vunpack.c.l.b16 %v181
      %v259 = vunpack.c.l.b16 %v182
      %v260 = vunpack.c.l.b16 %v183
      %v261 = vunpack.c.l.b16 %v184
      %v262 = vunpack.c.l.b16 %v185
      %v263 = vunpack.c.l.b16 %v186
      %v264 = vunpack.c.l.b16 %v187
      %v265 = vunpack.c.l.b16 %v188
      %v266 = vunpack.c.l.b16 %v189
      %v267 = vunpack.c.l.b16 %v190
      %v268 = vunpack.c.l.b16 %v191
      %v269 = vunpack.c.l.b16 %v192
      %v270 = vunpack.c.l.b16 %v193
      %v271 = vunpack.c.l.b16 %v194
      %v272 = vunpack.c.l.b16 %v195
      %v273 = vunpack.c.l.b16 %v196
      %v274 = vunpack.c.l.b16 %v197
      %v275 = vunpack.c.l.b16 %v198
      %v276 = vunpack.c.l.b16 %v199
      %v277 = vunpack.c.l.b16 %v200
      %v278 = vunpack.c.l.b16 %v201
      %v279 = vunpack.c.l.b16 %v202
      %v280 = vunpack.c.l.b16 %v203
      %v281 = vunpack.c.l.b16 %v204
      %v282 = vunpack.c.l.b16 %v205
      %v283 = vunpack.c.l.b16 %v206
      %v284 = vpack.c.b16 %v253, %v252
      %v285 = vpack.c.b16 %v255, %v254
      %v286 = vpack.c.b16 %v257, %v256
      %v287 = vpack.c.b16 %v259, %v258
      %v288 = vpack.c.b16 %v261, %v260
      %v289 = vpack.c.b16 %v263, %v262
      %v290 = vpack.c.b16 %v265, %v264
      %v291 = vpack.c.b16 %v267, %v266
      %v292 = vpack.c.b16 %v269, %v268
      %v293 = vpack.c.b16 %v271, %v270
      %v294 = vpack.c.b16 %v273, %v272
      %v295 = vpack.c.b16 %v275, %v274
      %v296 = vpack.c.b16 %v277, %v276
      %v297 = vpack.c.b16 %v279, %v278
      %v298 = vpack.c.b16 %v281, %v280
      %v299 = vpack.c.b16 %v283, %v282
      %v309 = vunpack.c.l.b16 %v207
      %v310 = vunpack.c.l.b16 %v208
      %v311 = vunpack.c.l.b16 %v209
      %v312 = vunpack.c.l.b16 %v210
      %v313 = vunpack.c.l.b16 %v211
      %v314 = vunpack.c.l.b16 %v212
      %v315 = vunpack.c.l.b16 %v213
      %v316 = vunpack.c.l.b16 %v214
      %v317 = vunpack.c.l.b16 %v215
      %v318 = vpack.c.b16 %v310, %v309
      %v319 = vpack.c.b16 %v312, %v311
      %v320 = vpack.c.b16 %v314, %v313
      %v321 = vpack.c.b16 %v316, %v315
      %v322 = vpack.c.b16 %v317, %v317
      %vm327 = vcmask 588800
      %v329 = vsel %vm327, %v284, 0
      %v332 = vsel %vm327, %v285, 0
      %v335 = vsel %vm327, %v286, 0
      %v338 = vsel %vm327, %v287, 0
      %v341 = vsel %vm327, %v288, 0
      %v344 = vsel %vm327, %v289, 0
      %v347 = vsel %vm327, %v290, 0
      %v350 = vsel %vm327, %v291, 0
      %v353 = vsel %vm327, %v292, 0
      %v356 = vsel %vm327, %v293, 0
      %v359 = vsel %vm327, %v294, 0
      %v362 = vsel %vm327, %v295, 0
      %v365 = vsel %vm327, %v296, 0
      %v368 = vsel %vm327, %v297, 0
      %v371 = vsel %vm327, %v298, 0
      %v374 = vsel %vm327, %v299, 0
      %vm376 = vcmask 1043456
      %v378 = vsel %vm376, %v322, 0
      %380 = vmatpush.bf16.msra.mxu0 0
      %381 = vmatpush.bf16.msra.mxu0 0
      %382 = vmatpush.bf16.msra.mxu0 0
      %383 = vmatpush.bf16.msra.mxu0 %v378
      %384 = vmatpush.bf16.msra.mxu0 %v321
      %385 = vmatpush.bf16.msra.mxu0 %v320
      %386 = vmatpush.bf16.msra.mxu0 %v319
      %387 = vmatpush.bf16.msra.mxu0 %v318
      %388 = vmatmul.bf16.gmra.mxu0 %v329
      %v389 = vpop.f32.mrf.mxu0
      %v390 = vadd.f32 %v218, %v389
      %v391 = vpop.f32.mrf.mxu0
      %v392 = vadd.f32 %v218, %v391
      %393 = vmatmul.bf16.gmra.mxu0 %v332
      %v394 = vpop.f32.mrf.mxu0
      %v395 = vadd.f32 %v218, %v394
      %v396 = vpop.f32.mrf.mxu0
      %v397 = vadd.f32 %v218, %v396
      %398 = vmatmul.bf16.gmra.mxu0 %v335
      %v399 = vpop.f32.mrf.mxu0
      %v400 = vadd.f32 %v218, %v399
      %v401 = vpop.f32.mrf.mxu0
      %v402 = vadd.f32 %v218, %v401
      %403 = vmatmul.bf16.gmra.mxu0 %v338
      %v404 = vpop.f32.mrf.mxu0
      %v405 = vadd.f32 %v218, %v404
      %v406 = vpop.f32.mrf.mxu0
      %v407 = vadd.f32 %v218, %v406
      %408 = vmatmul.bf16.gmra.mxu0 %v341
      %v409 = vpop.f32.mrf.mxu0
      %v410 = vadd.f32 %v218, %v409
      %v411 = vpop.f32.mrf.mxu0
      %v412 = vadd.f32 %v218, %v411
      %413 = vmatmul.bf16.gmra.mxu0 %v344
      %v414 = vpop.f32.mrf.mxu0
      %v415 = vadd.f32 %v218, %v414
      %v416 = vpop.f32.mrf.mxu0
      %v417 = vadd.f32 %v218, %v416
      %418 = vmatmul.bf16.gmra.mxu0 %v347
      %v419 = vpop.f32.mrf.mxu0
      %v420 = vadd.f32 %v218, %v419
      %v421 = vpop.f32.mrf.mxu0
      %v422 = vadd.f32 %v218, %v421
      %423 = vmatmul.bf16.gmra.mxu0 %v350
      %v424 = vpop.f32.mrf.mxu0
      %v425 = vadd.f32 %v218, %v424
      %v426 = vpop.f32.mrf.mxu0
      %v427 = vadd.f32 %v218, %v426
      %428 = vmatmul.bf16.gmra.mxu0 %v353
      %v429 = vpop.f32.mrf.mxu0
      %v430 = vadd.f32 %v218, %v429
      %v431 = vpop.f32.mrf.mxu0
      %v432 = vadd.f32 %v218, %v431
      %433 = vmatmul.bf16.gmra.mxu0 %v356
      %v434 = vpop.f32.mrf.mxu0
      %v435 = vadd.f32 %v218, %v434
      %v436 = vpop.f32.mrf.mxu0
      %v437 = vadd.f32 %v218, %v436
      %438 = vmatmul.bf16.gmra.mxu0 %v359
      %v439 = vpop.f32.mrf.mxu0
      %v440 = vadd.f32 %v218, %v439
      %v441 = vpop.f32.mrf.mxu0
      %v442 = vadd.f32 %v218, %v441
      %443 = vmatmul.bf16.gmra.mxu0 %v362
      %v444 = vpop.f32.mrf.mxu0
      %v445 = vadd.f32 %v218, %v444
      %v446 = vpop.f32.mrf.mxu0
      %v447 = vadd.f32 %v218, %v446
      %448 = vmatmul.bf16.gmra.mxu0 %v365
      %v449 = vpop.f32.mrf.mxu0
      %v450 = vadd.f32 %v218, %v449
      %v451 = vpop.f32.mrf.mxu0
      %v452 = vadd.f32 %v218, %v451
      %453 = vmatmul.bf16.gmra.mxu0 %v368
      %v454 = vpop.f32.mrf.mxu0
      %v455 = vadd.f32 %v218, %v454
      %v456 = vpop.f32.mrf.mxu0
      %v457 = vadd.f32 %v218, %v456
      %458 = vmatmul.bf16.gmra.mxu0 %v371
      %v459 = vpop.f32.mrf.mxu0
      %v460 = vadd.f32 %v218, %v459
      %v461 = vpop.f32.mrf.mxu0
      %v462 = vadd.f32 %v218, %v461
      %463 = vmatmul.bf16.gmra.mxu0 %v374
      %v464 = vpop.f32.mrf.mxu0
      %v465 = vadd.f32 %v218, %v464
      %v466 = vpop.f32.mrf.mxu0
      %v467 = vadd.f32 %v218, %v466
      %468 = vdwg.mxu0
      %v469 = vpack.c.bf16 %v390, %v390
      %v470 = vpack.c.bf16 %v392, %v392
      %v471 = vpack.c.bf16 %v395, %v395
      %v472 = vpack.c.bf16 %v397, %v397
      %v473 = vpack.c.bf16 %v400, %v400
      %v474 = vpack.c.bf16 %v402, %v402
      %v475 = vpack.c.bf16 %v405, %v405
      %v476 = vpack.c.bf16 %v407, %v407
      %v477 = vpack.c.bf16 %v410, %v410
      %v478 = vpack.c.bf16 %v412, %v412
      %v479 = vpack.c.bf16 %v415, %v415
      %v480 = vpack.c.bf16 %v417, %v417
      %v481 = vpack.c.bf16 %v420, %v420
      %v482 = vpack.c.bf16 %v422, %v422
      %v483 = vpack.c.bf16 %v425, %v425
      %v484 = vpack.c.bf16 %v427, %v427
      %v485 = vpack.c.bf16 %v430, %v430
      %v486 = vpack.c.bf16 %v432, %v432
      %v487 = vpack.c.bf16 %v435, %v435
      %v488 = vpack.c.bf16 %v437, %v437
      %v489 = vpack.c.bf16 %v440, %v440
      %v490 = vpack.c.bf16 %v442, %v442
      %v491 = vpack.c.bf16 %v445, %v445
      %v492 = vpack.c.bf16 %v447, %v447
      %v493 = vpack.c.bf16 %v450, %v450
      %v494 = vpack.c.bf16 %v452, %v452
      %v495 = vpack.c.bf16 %v455, %v455
      %v496 = vpack.c.bf16 %v457, %v457
      %v497 = vpack.c.bf16 %v460, %v460
      %v498 = vpack.c.bf16 %v462, %v462
      %v499 = vpack.c.bf16 %v465, %v465
      %v500 = vpack.c.bf16 %v467, %v467
      %vm501 = vcmask 125952
      %502 = vst.msk [vmem:[%s172] sm:$0xf] %vm501, %v469
      %503 = vst.msk [vmem:[%s172 + $0x4] sm:$0xf] %vm501, %v470
      %504 = vst.msk [vmem:[%s172 + $0x8] sm:$0xf] %vm501, %v471
      %505 = vst.msk [vmem:[%s172 + $0xc] sm:$0xf] %vm501, %v472
      %506 = vst.msk [vmem:[%s172 + $0x10] sm:$0xf] %vm501, %v473
      %507 = vst.msk [vmem:[%s172 + $0x14] sm:$0xf] %vm501, %v474
      %508 = vst.msk [vmem:[%s172 + $0x18] sm:$0xf] %vm501, %v475
      %509 = vst.msk [vmem:[%s172 + $0x1c] sm:$0xf] %vm501, %v476
      %510 = vst.msk [vmem:[%s172 + $0x20] sm:$0xf] %vm501, %v477
      %511 = vst.msk [vmem:[%s172 + $0x24] sm:$0xf] %vm501, %v478
      %512 = vst.msk [vmem:[%s172 + $0x28] sm:$0xf] %vm501, %v479
      %513 = vst.msk [vmem:[%s172 + $0x2c] sm:$0xf] %vm501, %v480
      %514 = vst.msk [vmem:[%s172 + $0x30] sm:$0xf] %vm501, %v481
      %515 = vst.msk [vmem:[%s172 + $0x34] sm:$0xf] %vm501, %v482
      %516 = vst.msk [vmem:[%s172 + $0x38] sm:$0xf] %vm501, %v483
      %517 = vst.msk [vmem:[%s172 + $0x3c] sm:$0xf] %vm501, %v484
      %518 = vst.msk [vmem:[%s172 + $0x40] sm:$0xf] %vm501, %v485
      %519 = vst.msk [vmem:[%s172 + $0x44] sm:$0xf] %vm501, %v486
      %520 = vst.msk [vmem:[%s172 + $0x48] sm:$0xf] %vm501, %v487
      %521 = vst.msk [vmem:[%s172 + $0x4c] sm:$0xf] %vm501, %v488
      %522 = vst.msk [vmem:[%s172 + $0x50] sm:$0xf] %vm501, %v489
      %523 = vst.msk [vmem:[%s172 + $0x54] sm:$0xf] %vm501, %v490
      %524 = vst.msk [vmem:[%s172 + $0x58] sm:$0xf] %vm501, %v491
      %525 = vst.msk [vmem:[%s172 + $0x5c] sm:$0xf] %vm501, %v492
      %526 = vst.msk [vmem:[%s172 + $0x60] sm:$0xf] %vm501, %v493
      %527 = vst.msk [vmem:[%s172 + $0x64] sm:$0xf] %vm501, %v494
      %528 = vst.msk [vmem:[%s172 + $0x68] sm:$0xf] %vm501, %v495
      %529 = vst.msk [vmem:[%s172 + $0x6c] sm:$0xf] %vm501, %v496
      %530 = vst.msk [vmem:[%s172 + $0x70] sm:$0xf] %vm501, %v497
      %531 = vst.msk [vmem:[%s172 + $0x74] sm:$0xf] %vm501, %v498
      %532 = vst.msk [vmem:[%s172 + $0x78] sm:$0xf] %vm501, %v499
      %533 = vst.msk [vmem:[%s172 + $0x7c] sm:$0xf] %vm501, %v500
      %s534 = smul.u32 32, %s14
      %p535 = scmp.lt.s32.totalorder %s534, 63
      %s536 = scalar_select %p535, %s534, 63
      %s537 = smul.addr %s536, 4
      %s538 = scalar_lea.vmem %s3, %s537
      // Predicated region
      $region33: #{cdc1_forward.6} parent=31 // pred_check
        %p539 = pneg %p100
      $region34: #{cdc1_forward.6} parent=31 // pred_check_branch
        %541 = sbr.rel (%p539) target = $region36
      $region35: #{cdc1_forward.6} parent=31 // pred_region
        %s542 = smul.u32 32, %s14
      $region36: #{cdc1_forward.6} parent=31 // pred_fallthru
        _
    $region32: #{cdc1_forward.6} parent=5 // pred_fallthru
      _
    %p543 = scmp.le.s32.totalorder 2, %s9
    // Predicated region
    $region37: #{cdc1_forward.6} parent=5 // pred_check
      %p544 = pneg %p543
    $region38: #{cdc1_forward.6} parent=5 // pred_check_branch
      %546 = sbr.rel (%p544) target = $region40
    $region39: #{cdc1_forward.6} parent=5 // pred_region
      %s547 = ssub.s32 %s9, 2
      // Predicated region
      $region41: #{cdc1_forward.6} parent=39 // pred_check
        %p548 = pneg %p106
      $region42: #{cdc1_forward.6} parent=39 // pred_check_branch
        %550 = sbr.rel (%p548) target = $region44
      $region43: #{cdc1_forward.6} parent=39 // pred_region
        %s551 = smul.u32 32, %s15
        %p552 = scmp.lt.s32.totalorder %s551, 63
        %s553 = scalar_select %p552, %s551, 63
        %s554 = smul.addr %s553, 4
        %s555 = scalar_lea.vmem %s3, %s554
      $region44: #{cdc1_forward.6} parent=39 // pred_fallthru
        _
    $region40: #{cdc1_forward.6} parent=5 // pred_fallthru
      _
  $region6: #{cdc1_forward.6} parent=0 // loop_footer
    %s13 = sadd.s32 1, %s9
  $region7: #{cdc1_forward.6} parent=0 // loop_footer_branch
    %8 = sbr.rel target = $region3
  $region8: #{cdc1_forward.6} parent=0 // loop_exit
    _

// kernel: cdc1_forward.8
$region0: #{cdc1_forward.8}
  #allocation0 [shape = 'u32[]', space=smem, size = 0x4, offset = 0x4, fixed_abs, tag = 'smem constant byte address 0x4 - core index']
  #allocation1 [shape = 'u32[72,128]{1,0:T(1,128)}', space=vmem, size = 0x9000, scoped, tag = 'internal scratch']
  %s0 = inlined_call_operand.vmem [shape: bf16[512,72], index: 0, kind: input, shape index: {}]
  %s1 = inlined_call_operand.vmem [shape: bf16[72,8], index: 1, kind: input, shape index: {}]
  %s2 = inlined_call_operand.vmem [shape: f32[1,8], index: 2, kind: input, shape index: {}]
  %s3 = inlined_call_operand.vmem [shape: bf16[512,8], index: 3, kind: output, shape index: {}]
  %s4 = sld [smem:[#allocation0]]
  $region45: #{cdc1_forward.8} parent=0
    _
  %s6 = ssub.s32 1, %s4
  %s7 = scalar_select 0, %s6, %s4
  loop: start=0, step=1, limit=4
  $region2: #{cdc1_forward.8} parent=0 // loop_pre_header
    _
  $region3: #{cdc1_forward.8} parent=0 // loop_header
    %s9 = sphi 0, %s13
    %p10 = scmp.ge.s32.totalorder %s9, 4
    %s19 = sphi 0, %s21
    %s22 = sphi 0, %s19
    %s23 = sphi 0, %s22
    %s39 = sphi 0, %s23
    %s43 = sphi 0, %s43
    %s45 = sphi 0, %s43
    %s46 = sphi 0, %s45
    %s60 = sphi 0, %s46
    %s64 = sphi 0, %s64
    %s66 = sphi 0, %s64
    %s67 = sphi 0, %s66
    %s81 = sphi 0, %s67
    %s87 = sphi 0, %s89
    %s90 = sphi 0, %s87
    %s91 = sphi 0, %s90
    %s107 = sphi 0, %s91
  $region4: #{cdc1_forward.8} parent=0 // loop_header_branch
    %12 = sbr.rel (%p10) target = $region8
  $region5: #{cdc1_forward.8} parent=0 // loop_body
    %s14 = ssub.s32 %s9, 1
    %s15 = ssub.s32 %s9, 2
    %s16 = sadd.s32 %s9, 1
    %s17 = ssub.s32 %s9, %s16
    %p18 = scmp.eq.s32.totalorder %s17, 0
    %s20 = sadd.s32 %s19, 1
    %s21 = scalar_select %p18, %s19, %s20
    %p24 = pneg %p18
    %p25 = scmp.eq.s32.totalorder %s9, 1
    %p26 = por %p24, %p25
    %p27 = scmp.ne.s32.totalorder %s19, %s22
    %p28 = scmp.eq.s32.totalorder %s9, 0
    %p29 = por %p27, %p28
    %p30 = scmp.ne.s32.totalorder %s19, %s22
    %p31 = scmp.eq.s32.totalorder %s14, 1
    %p32 = por %p30, %p31
    %p33 = scmp.ne.s32.totalorder %s22, %s23
    %p34 = scmp.eq.s32.totalorder %s14, 0
    %p35 = por %p33, %p34
    %p36 = scmp.ne.s32.totalorder %s22, %s23
    %p37 = scmp.eq.s32.totalorder %s15, 1
    %p38 = por %p36, %p37
    %p40 = scmp.ne.s32.totalorder %s23, %s39
    %p41 = scmp.eq.s32.totalorder %s15, 0
    %p42 = por %p40, %p41
    %s44 = sadd.s32 %s43, 1
    %p47 = scmp.eq.s32.totalorder %s9, 1
    %p48 = scmp.ne.s32.totalorder %s43, %s45
    %p49 = scmp.eq.s32.totalorder %s9, 0
    %p50 = por %p48, %p49
    %p51 = scmp.ne.s32.totalorder %s43, %s45
    %p52 = scmp.eq.s32.totalorder %s14, 1
    %p53 = por %p51, %p52
    %p54 = scmp.ne.s32.totalorder %s45, %s46
    %p55 = scmp.eq.s32.totalorder %s14, 0
    %p56 = por %p54, %p55
    %p57 = scmp.ne.s32.totalorder %s45, %s46
    %p58 = scmp.eq.s32.totalorder %s15, 1
    %p59 = por %p57, %p58
    %p61 = scmp.ne.s32.totalorder %s46, %s60
    %p62 = scmp.eq.s32.totalorder %s15, 0
    %p63 = por %p61, %p62
    %s65 = sadd.s32 %s64, 1
    %p68 = scmp.eq.s32.totalorder %s9, 1
    %p69 = scmp.ne.s32.totalorder %s64, %s66
    %p70 = scmp.eq.s32.totalorder %s9, 0
    %p71 = por %p69, %p70
    %p72 = scmp.ne.s32.totalorder %s64, %s66
    %p73 = scmp.eq.s32.totalorder %s14, 1
    %p74 = por %p72, %p73
    %p75 = scmp.ne.s32.totalorder %s66, %s67
    %p76 = scmp.eq.s32.totalorder %s14, 0
    %p77 = por %p75, %p76
    %p78 = scmp.ne.s32.totalorder %s66, %s67
    %p79 = scmp.eq.s32.totalorder %s15, 1
    %p80 = por %p78, %p79
    %p82 = scmp.ne.s32.totalorder %s67, %s81
    %p83 = scmp.eq.s32.totalorder %s15, 0
    %p84 = por %p82, %p83
    %s85 = ssub.s32 %s9, %s16
    %p86 = scmp.eq.s32.totalorder %s85, 0
    %s88 = sadd.s32 %s87, 1
    %s89 = scalar_select %p86, %s87, %s88
    %p92 = pneg %p86
    %p93 = scmp.eq.s32.totalorder %s9, 1
    %p94 = por %p92, %p93
    %p95 = scmp.ne.s32.totalorder %s87, %s90
    %p96 = scmp.eq.s32.totalorder %s9, 0
    %p97 = por %p95, %p96
    %p98 = scmp.ne.s32.totalorder %s87, %s90
    %p99 = scmp.eq.s32.totalorder %s14, 1
    %p100 = por %p98, %p99
    %p101 = scmp.ne.s32.totalorder %s90, %s91
    %p102 = scmp.eq.s32.totalorder %s14, 0
    %p103 = por %p101, %p102
    %p104 = scmp.ne.s32.totalorder %s90, %s91
    %p105 = scmp.eq.s32.totalorder %s15, 1
    %p106 = por %p104, %p105
    %p108 = scmp.ne.s32.totalorder %s91, %s107
    %p109 = scmp.eq.s32.totalorder %s15, 0
    %p110 = por %p108, %p109
    %p111 = scmp.le.s32.totalorder 1, %s9
    %p112 = scmp.lt.s32.totalorder %s9, 3
    %p113 = pnand %p111, %p112
    %p114 = pneg %p113
    // Predicated region
    $region9: #{cdc1_forward.8} parent=5 // pred_check
      _
    $region10: #{cdc1_forward.8} parent=5 // pred_check_branch
      %116 = sbr.rel (%p113) target = $region12
    $region11: #{cdc1_forward.8} parent=5 // pred_region
      %s117 = ssub.s32 %s9, 1
      // Predicated region
      $region13: #{cdc1_forward.8} parent=11 // pred_check
        %p118 = pneg %p56
      $region14: #{cdc1_forward.8} parent=11 // pred_check_branch
        %120 = sbr.rel (%p118) target = $region16
      $region15: #{cdc1_forward.8} parent=11 // pred_region
        _
      $region16: #{cdc1_forward.8} parent=11 // pred_fallthru
        _
      // Predicated region
      $region17: #{cdc1_forward.8} parent=11 // pred_check
        %p121 = pneg %p77
      $region18: #{cdc1_forward.8} parent=11 // pred_check_branch
        %123 = sbr.rel (%p121) target = $region20
      $region19: #{cdc1_forward.8} parent=11 // pred_region
        _
      $region20: #{cdc1_forward.8} parent=11 // pred_fallthru
        _
    $region12: #{cdc1_forward.8} parent=5 // pred_fallthru
      _
    %p124 = scmp.lt.s32.totalorder %s9, 2
    // Predicated region
    $region21: #{cdc1_forward.8} parent=5 // pred_check
      %p125 = pneg %p124
    $region22: #{cdc1_forward.8} parent=5 // pred_check_branch
      %127 = sbr.rel (%p125) target = $region24
    $region23: #{cdc1_forward.8} parent=5 // pred_region
      // Predicated region
      $region25: #{cdc1_forward.8} parent=23 // pred_check
        %p128 = pneg %p29
      $region26: #{cdc1_forward.8} parent=23 // pred_check_branch
        %130 = sbr.rel (%p128) target = $region28
      $region27: #{cdc1_forward.8} parent=23 // pred_region
        %s131 = smul.u32 32, %s9
        %p132 = scmp.lt.s32.totalorder %s131, 63
        %s133 = scalar_select %p132, %s131, 63
        %s134 = smul.addr %s133, 4
        %s135 = scalar_lea.vmem %s0, %s134
        %s136 = smul.u32 32, %s9
      $region28: #{cdc1_forward.8} parent=23 // pred_fallthru
        _
    $region24: #{cdc1_forward.8} parent=5 // pred_fallthru
      _
    %p137 = scmp.le.s32.totalorder 1, %s9
    %p138 = scmp.lt.s32.totalorder %s9, 3
    %p139 = pnand %p137, %p138
    %p140 = pneg %p139
    // Predicated region
    $region29: #{cdc1_forward.8} parent=5 // pred_check
      _
    $region30: #{cdc1_forward.8} parent=5 // pred_check_branch
      %142 = sbr.rel (%p139) target = $region32
    $region31: #{cdc1_forward.8} parent=5 // pred_region
      %s143 = ssub.s32 %s9, 1
      %s144 = smul.u32 32, %s14
      %p145 = scmp.lt.s32.totalorder %s144, 63
      %s146 = scalar_select %p145, %s144, 63
      %s147 = smul.addr %s146, 4
      %s148 = scalar_lea.vmem %s0, %s147
      %p149 = pneg %p35
      %p150 = pneg %p32
      %p151 = pneg %p56
      %p152 = pneg %p53
      %p153 = pneg %p77
      %p154 = pneg %p74
      %p155 = pneg %p103
      %p156 = pneg %p100
      %s157 = smul.u32 32, %s14
      %p158 = scmp.lt.s32.totalorder %s157, 63
      %s159 = scalar_select %p158, %s157, 63
      %s160 = smul.addr %s159, 4
      %s161 = scalar_lea.vmem %s3, %s160
      %s162 = smul.u32 32, %s14
      %p163 = scmp.lt.s32.totalorder %s162, 63
      %s164 = scalar_select %p163, %s162, 63
      %s165 = smul.addr %s164, 4
      %s166 = scalar_lea.vmem %s0, %s165
      %s167 = smul.u32 32, %s14
      %s168 = smul.u32 32, %s14
      %p169 = scmp.lt.s32.totalorder %s168, 63
      %s170 = scalar_select %p169, %s168, 63
      %s171 = smul.addr %s170, 4
      %s172 = scalar_lea.vmem %s3, %s171
      %s173 = smul.u32 32, %s14
      %v175 = vld [vmem:[%s166] sm:$0xf]
      %v176 = vld [vmem:[%s166 + $0x4] sm:$0xf]
      %v177 = vld [vmem:[%s166 + $0x8] sm:$0xf]
      %v178 = vld [vmem:[%s166 + $0xc] sm:$0xf]
      %v179 = vld [vmem:[%s166 + $0x10] sm:$0xf]
      %v180 = vld [vmem:[%s166 + $0x14] sm:$0xf]
      %v181 = vld [vmem:[%s166 + $0x18] sm:$0xf]
      %v182 = vld [vmem:[%s166 + $0x1c] sm:$0xf]
      %v183 = vld [vmem:[%s166 + $0x20] sm:$0xf]
      %v184 = vld [vmem:[%s166 + $0x24] sm:$0xf]
      %v185 = vld [vmem:[%s166 + $0x28] sm:$0xf]
      %v186 = vld [vmem:[%s166 + $0x2c] sm:$0xf]
      %v187 = vld [vmem:[%s166 + $0x30] sm:$0xf]
      %v188 = vld [vmem:[%s166 + $0x34] sm:$0xf]
      %v189 = vld [vmem:[%s166 + $0x38] sm:$0xf]
      %v190 = vld [vmem:[%s166 + $0x3c] sm:$0xf]
      %v191 = vld [vmem:[%s166 + $0x40] sm:$0xf]
      %v192 = vld [vmem:[%s166 + $0x44] sm:$0xf]
      %v193 = vld [vmem:[%s166 + $0x48] sm:$0xf]
      %v194 = vld [vmem:[%s166 + $0x4c] sm:$0xf]
      %v195 = vld [vmem:[%s166 + $0x50] sm:$0xf]
      %v196 = vld [vmem:[%s166 + $0x54] sm:$0xf]
      %v197 = vld [vmem:[%s166 + $0x58] sm:$0xf]
      %v198 = vld [vmem:[%s166 + $0x5c] sm:$0xf]
      %v199 = vld [vmem:[%s166 + $0x60] sm:$0xf]
      %v200 = vld [vmem:[%s166 + $0x64] sm:$0xf]
      %v201 = vld [vmem:[%s166 + $0x68] sm:$0xf]
      %v202 = vld [vmem:[%s166 + $0x6c] sm:$0xf]
      %v203 = vld [vmem:[%s166 + $0x70] sm:$0xf]
      %v204 = vld [vmem:[%s166 + $0x74] sm:$0xf]
      %v205 = vld [vmem:[%s166 + $0x78] sm:$0xf]
      %v206 = vld [vmem:[%s166 + $0x7c] sm:$0xf]
      %v207 = vld [vmem:[%s1] sm:$0xf]
      %v208 = vld [vmem:[%s1 + $0x4] sm:$0xf]
      %v209 = vld [vmem:[%s1 + $0x8] sm:$0xf]
      %v210 = vld [vmem:[%s1 + $0xc] sm:$0xf]
      %v211 = vld [vmem:[%s1 + $0x10] sm:$0xf]
      %v212 = vld [vmem:[%s1 + $0x14] sm:$0xf]
      %v213 = vld [vmem:[%s1 + $0x18] sm:$0xf]
      %v214 = vld [vmem:[%s1 + $0x1c] sm:$0xf]
      %v215 = vld [vmem:[%s1 + $0x20] sm:$0xf]
      %v216 = vld [vmem:[%s2] sm:$0x1]
      %v218 = vperm.slane %v216, 0
      %v252 = vunpack.c.l.b16 %v175
      %v253 = vunpack.c.l.b16 %v176
      %v254 = vunpack.c.l.b16 %v177
      %v255 = vunpack.c.l.b16 %v178
      %v256 = vunpack.c.l.b16 %v179
      %v257 = vunpack.c.l.b16 %v180
      %v258 = vunpack.c.l.b16 %v181
      %v259 = vunpack.c.l.b16 %v182
      %v260 = vunpack.c.l.b16 %v183
      %v261 = vunpack.c.l.b16 %v184
      %v262 = vunpack.c.l.b16 %v185
      %v263 = vunpack.c.l.b16 %v186
      %v264 = vunpack.c.l.b16 %v187
      %v265 = vunpack.c.l.b16 %v188
      %v266 = vunpack.c.l.b16 %v189
      %v267 = vunpack.c.l.b16 %v190
      %v268 = vunpack.c.l.b16 %v191
      %v269 = vunpack.c.l.b16 %v192
      %v270 = vunpack.c.l.b16 %v193
      %v271 = vunpack.c.l.b16 %v194
      %v272 = vunpack.c.l.b16 %v195
      %v273 = vunpack.c.l.b16 %v196
      %v274 = vunpack.c.l.b16 %v197
      %v275 = vunpack.c.l.b16 %v198
      %v276 = vunpack.c.l.b16 %v199
      %v277 = vunpack.c.l.b16 %v200
      %v278 = vunpack.c.l.b16 %v201
      %v279 = vunpack.c.l.b16 %v202
      %v280 = vunpack.c.l.b16 %v203
      %v281 = vunpack.c.l.b16 %v204
      %v282 = vunpack.c.l.b16 %v205
      %v283 = vunpack.c.l.b16 %v206
      %v284 = vpack.c.b16 %v253, %v252
      %v285 = vpack.c.b16 %v255, %v254
      %v286 = vpack.c.b16 %v257, %v256
      %v287 = vpack.c.b16 %v259, %v258
      %v288 = vpack.c.b16 %v261, %v260
      %v289 = vpack.c.b16 %v263, %v262
      %v290 = vpack.c.b16 %v265, %v264
      %v291 = vpack.c.b16 %v267, %v266
      %v292 = vpack.c.b16 %v269, %v268
      %v293 = vpack.c.b16 %v271, %v270
      %v294 = vpack.c.b16 %v273, %v272
      %v295 = vpack.c.b16 %v275, %v274
      %v296 = vpack.c.b16 %v277, %v276
      %v297 = vpack.c.b16 %v279, %v278
      %v298 = vpack.c.b16 %v281, %v280
      %v299 = vpack.c.b16 %v283, %v282
      %v309 = vunpack.c.l.b16 %v207
      %v310 = vunpack.c.l.b16 %v208
      %v311 = vunpack.c.l.b16 %v209
      %v312 = vunpack.c.l.b16 %v210
      %v313 = vunpack.c.l.b16 %v211
      %v314 = vunpack.c.l.b16 %v212
      %v315 = vunpack.c.l.b16 %v213
      %v316 = vunpack.c.l.b16 %v214
      %v317 = vunpack.c.l.b16 %v215
      %v318 = vpack.c.b16 %v310, %v309
      %v319 = vpack.c.b16 %v312, %v311
      %v320 = vpack.c.b16 %v314, %v313
      %v321 = vpack.c.b16 %v316, %v315
      %v322 = vpack.c.b16 %v317, %v317
      %vm327 = vcmask 588800
      %v329 = vsel %vm327, %v284, 0
      %v332 = vsel %vm327, %v285, 0
      %v335 = vsel %vm327, %v286, 0
      %v338 = vsel %vm327, %v287, 0
      %v341 = vsel %vm327, %v288, 0
      %v344 = vsel %vm327, %v289, 0
      %v347 = vsel %vm327, %v290, 0
      %v350 = vsel %vm327, %v291, 0
      %v353 = vsel %vm327, %v292, 0
      %v356 = vsel %vm327, %v293, 0
      %v359 = vsel %vm327, %v294, 0
      %v362 = vsel %vm327, %v295, 0
      %v365 = vsel %vm327, %v296, 0
      %v368 = vsel %vm327, %v297, 0
      %v371 = vsel %vm327, %v298, 0
      %v374 = vsel %vm327, %v299, 0
      %vm376 = vcmask 1043456
      %v378 = vsel %vm376, %v322, 0
      %380 = vmatpush.bf16.msra.mxu0 0
      %381 = vmatpush.bf16.msra.mxu0 0
      %382 = vmatpush.bf16.msra.mxu0 0
      %383 = vmatpush.bf16.msra.mxu0 %v378
      %384 = vmatpush.bf16.msra.mxu0 %v321
      %385 = vmatpush.bf16.msra.mxu0 %v320
      %386 = vmatpush.bf16.msra.mxu0 %v319
      %387 = vmatpush.bf16.msra.mxu0 %v318
      %388 = vmatmul.bf16.gmra.mxu0 %v329
      %v389 = vpop.f32.mrf.mxu0
      %v390 = vadd.f32 %v218, %v389
      %v391 = vpop.f32.mrf.mxu0
      %v392 = vadd.f32 %v218, %v391
      %393 = vmatmul.bf16.gmra.mxu0 %v332
      %v394 = vpop.f32.mrf.mxu0
      %v395 = vadd.f32 %v218, %v394
      %v396 = vpop.f32.mrf.mxu0
      %v397 = vadd.f32 %v218, %v396
      %398 = vmatmul.bf16.gmra.mxu0 %v335
      %v399 = vpop.f32.mrf.mxu0
      %v400 = vadd.f32 %v218, %v399
      %v401 = vpop.f32.mrf.mxu0
      %v402 = vadd.f32 %v218, %v401
      %403 = vmatmul.bf16.gmra.mxu0 %v338
      %v404 = vpop.f32.mrf.mxu0
      %v405 = vadd.f32 %v218, %v404
      %v406 = vpop.f32.mrf.mxu0
      %v407 = vadd.f32 %v218, %v406
      %408 = vmatmul.bf16.gmra.mxu0 %v341
      %v409 = vpop.f32.mrf.mxu0
      %v410 = vadd.f32 %v218, %v409
      %v411 = vpop.f32.mrf.mxu0
      %v412 = vadd.f32 %v218, %v411
      %413 = vmatmul.bf16.gmra.mxu0 %v344
      %v414 = vpop.f32.mrf.mxu0
      %v415 = vadd.f32 %v218, %v414
      %v416 = vpop.f32.mrf.mxu0
      %v417 = vadd.f32 %v218, %v416
      %418 = vmatmul.bf16.gmra.mxu0 %v347
      %v419 = vpop.f32.mrf.mxu0
      %v420 = vadd.f32 %v218, %v419
      %v421 = vpop.f32.mrf.mxu0
      %v422 = vadd.f32 %v218, %v421
      %423 = vmatmul.bf16.gmra.mxu0 %v350
      %v424 = vpop.f32.mrf.mxu0
      %v425 = vadd.f32 %v218, %v424
      %v426 = vpop.f32.mrf.mxu0
      %v427 = vadd.f32 %v218, %v426
      %428 = vmatmul.bf16.gmra.mxu0 %v353
      %v429 = vpop.f32.mrf.mxu0
      %v430 = vadd.f32 %v218, %v429
      %v431 = vpop.f32.mrf.mxu0
      %v432 = vadd.f32 %v218, %v431
      %433 = vmatmul.bf16.gmra.mxu0 %v356
      %v434 = vpop.f32.mrf.mxu0
      %v435 = vadd.f32 %v218, %v434
      %v436 = vpop.f32.mrf.mxu0
      %v437 = vadd.f32 %v218, %v436
      %438 = vmatmul.bf16.gmra.mxu0 %v359
      %v439 = vpop.f32.mrf.mxu0
      %v440 = vadd.f32 %v218, %v439
      %v441 = vpop.f32.mrf.mxu0
      %v442 = vadd.f32 %v218, %v441
      %443 = vmatmul.bf16.gmra.mxu0 %v362
      %v444 = vpop.f32.mrf.mxu0
      %v445 = vadd.f32 %v218, %v444
      %v446 = vpop.f32.mrf.mxu0
      %v447 = vadd.f32 %v218, %v446
      %448 = vmatmul.bf16.gmra.mxu0 %v365
      %v449 = vpop.f32.mrf.mxu0
      %v450 = vadd.f32 %v218, %v449
      %v451 = vpop.f32.mrf.mxu0
      %v452 = vadd.f32 %v218, %v451
      %453 = vmatmul.bf16.gmra.mxu0 %v368
      %v454 = vpop.f32.mrf.mxu0
      %v455 = vadd.f32 %v218, %v454
      %v456 = vpop.f32.mrf.mxu0
      %v457 = vadd.f32 %v218, %v456
      %458 = vmatmul.bf16.gmra.mxu0 %v371
      %v459 = vpop.f32.mrf.mxu0
      %v460 = vadd.f32 %v218, %v459
      %v461 = vpop.f32.mrf.mxu0
      %v462 = vadd.f32 %v218, %v461
      %463 = vmatmul.bf16.gmra.mxu0 %v374
      %v464 = vpop.f32.mrf.mxu0
      %v465 = vadd.f32 %v218, %v464
      %v466 = vpop.f32.mrf.mxu0
      %v467 = vadd.f32 %v218, %v466
      %468 = vdwg.mxu0
      %v469 = vpack.c.bf16 %v390, %v390
      %v470 = vpack.c.bf16 %v392, %v392
      %v471 = vpack.c.bf16 %v395, %v395
      %v472 = vpack.c.bf16 %v397, %v397
      %v473 = vpack.c.bf16 %v400, %v400
      %v474 = vpack.c.bf16 %v402, %v402
      %v475 = vpack.c.bf16 %v405, %v405
      %v476 = vpack.c.bf16 %v407, %v407
      %v477 = vpack.c.bf16 %v410, %v410
      %v478 = vpack.c.bf16 %v412, %v412
      %v479 = vpack.c.bf16 %v415, %v415
      %v480 = vpack.c.bf16 %v417, %v417
      %v481 = vpack.c.bf16 %v420, %v420
      %v482 = vpack.c.bf16 %v422, %v422
      %v483 = vpack.c.bf16 %v425, %v425
      %v484 = vpack.c.bf16 %v427, %v427
      %v485 = vpack.c.bf16 %v430, %v430
      %v486 = vpack.c.bf16 %v432, %v432
      %v487 = vpack.c.bf16 %v435, %v435
      %v488 = vpack.c.bf16 %v437, %v437
      %v489 = vpack.c.bf16 %v440, %v440
      %v490 = vpack.c.bf16 %v442, %v442
      %v491 = vpack.c.bf16 %v445, %v445
      %v492 = vpack.c.bf16 %v447, %v447
      %v493 = vpack.c.bf16 %v450, %v450
      %v494 = vpack.c.bf16 %v452, %v452
      %v495 = vpack.c.bf16 %v455, %v455
      %v496 = vpack.c.bf16 %v457, %v457
      %v497 = vpack.c.bf16 %v460, %v460
      %v498 = vpack.c.bf16 %v462, %v462
      %v499 = vpack.c.bf16 %v465, %v465
      %v500 = vpack.c.bf16 %v467, %v467
      %vm501 = vcmask 60416
      %502 = vst.msk [vmem:[%s172] sm:$0xf] %vm501, %v469
      %503 = vst.msk [vmem:[%s172 + $0x4] sm:$0xf] %vm501, %v470
      %504 = vst.msk [vmem:[%s172 + $0x8] sm:$0xf] %vm501, %v471
      %505 = vst.msk [vmem:[%s172 + $0xc] sm:$0xf] %vm501, %v472
      %506 = vst.msk [vmem:[%s172 + $0x10] sm:$0xf] %vm501, %v473
      %507 = vst.msk [vmem:[%s172 + $0x14] sm:$0xf] %vm501, %v474
      %508 = vst.msk [vmem:[%s172 + $0x18] sm:$0xf] %vm501, %v475
      %509 = vst.msk [vmem:[%s172 + $0x1c] sm:$0xf] %vm501, %v476
      %510 = vst.msk [vmem:[%s172 + $0x20] sm:$0xf] %vm501, %v477
      %511 = vst.msk [vmem:[%s172 + $0x24] sm:$0xf] %vm501, %v478
      %512 = vst.msk [vmem:[%s172 + $0x28] sm:$0xf] %vm501, %v479
      %513 = vst.msk [vmem:[%s172 + $0x2c] sm:$0xf] %vm501, %v480
      %514 = vst.msk [vmem:[%s172 + $0x30] sm:$0xf] %vm501, %v481
      %515 = vst.msk [vmem:[%s172 + $0x34] sm:$0xf] %vm501, %v482
      %516 = vst.msk [vmem:[%s172 + $0x38] sm:$0xf] %vm501, %v483
      %517 = vst.msk [vmem:[%s172 + $0x3c] sm:$0xf] %vm501, %v484
      %518 = vst.msk [vmem:[%s172 + $0x40] sm:$0xf] %vm501, %v485
      %519 = vst.msk [vmem:[%s172 + $0x44] sm:$0xf] %vm501, %v486
      %520 = vst.msk [vmem:[%s172 + $0x48] sm:$0xf] %vm501, %v487
      %521 = vst.msk [vmem:[%s172 + $0x4c] sm:$0xf] %vm501, %v488
      %522 = vst.msk [vmem:[%s172 + $0x50] sm:$0xf] %vm501, %v489
      %523 = vst.msk [vmem:[%s172 + $0x54] sm:$0xf] %vm501, %v490
      %524 = vst.msk [vmem:[%s172 + $0x58] sm:$0xf] %vm501, %v491
      %525 = vst.msk [vmem:[%s172 + $0x5c] sm:$0xf] %vm501, %v492
      %526 = vst.msk [vmem:[%s172 + $0x60] sm:$0xf] %vm501, %v493
      %527 = vst.msk [vmem:[%s172 + $0x64] sm:$0xf] %vm501, %v494
      %528 = vst.msk [vmem:[%s172 + $0x68] sm:$0xf] %vm501, %v495
      %529 = vst.msk [vmem:[%s172 + $0x6c] sm:$0xf] %vm501, %v496
      %530 = vst.msk [vmem:[%s172 + $0x70] sm:$0xf] %vm501, %v497
      %531 = vst.msk [vmem:[%s172 + $0x74] sm:$0xf] %vm501, %v498
      %532 = vst.msk [vmem:[%s172 + $0x78] sm:$0xf] %vm501, %v499
      %533 = vst.msk [vmem:[%s172 + $0x7c] sm:$0xf] %vm501, %v500
      %s534 = smul.u32 32, %s14
      %p535 = scmp.lt.s32.totalorder %s534, 63
      %s536 = scalar_select %p535, %s534, 63
      %s537 = smul.addr %s536, 4
      %s538 = scalar_lea.vmem %s3, %s537
      // Predicated region
      $region33: #{cdc1_forward.8} parent=31 // pred_check
        %p539 = pneg %p100
      $region34: #{cdc1_forward.8} parent=31 // pred_check_branch
        %541 = sbr.rel (%p539) target = $region36
      $region35: #{cdc1_forward.8} parent=31 // pred_region
        %s542 = smul.u32 32, %s14
      $region36: #{cdc1_forward.8} parent=31 // pred_fallthru
        _
    $region32: #{cdc1_forward.8} parent=5 // pred_fallthru
      _
    %p543 = scmp.le.s32.totalorder 2, %s9
    // Predicated region
    $region37: #{cdc1_forward.8} parent=5 // pred_check
      %p544 = pneg %p543
    $region38: #{cdc1_forward.8} parent=5 // pred_check_branch
      %546 = sbr.rel (%p544) target = $region40
    $region39: #{cdc1_forward.8} parent=5 // pred_region
      %s547 = ssub.s32 %s9, 2
      // Predicated region
      $region41: #{cdc1_forward.8} parent=39 // pred_check
        %p548 = pneg %p106
      $region42: #{cdc1_forward.8} parent=39 // pred_check_branch
        %550 = sbr.rel (%p548) target = $region44
      $region43: #{cdc1_forward.8} parent=39 // pred_region
        %s551 = smul.u32 32, %s15
        %p552 = scmp.lt.s32.totalorder %s551, 63
        %s553 = scalar_select %p552, %s551, 63
        %s554 = smul.addr %s553, 4
        %s555 = scalar_lea.vmem %s3, %s554
      $region44: #{cdc1_forward.8} parent=39 // pred_fallthru
        _
    $region40: #{cdc1_forward.8} parent=5 // pred_fallthru
      _
  $region6: #{cdc1_forward.8} parent=0 // loop_footer
    %s13 = sadd.s32 1, %s9
  $region7: #{cdc1_forward.8} parent=0 // loop_footer_branch
    %8 = sbr.rel target = $region3
  $region8: #{cdc1_forward.8} parent=0 // loop_exit
    _

// kernel: cdc1_forward.9
$region0: #{cdc1_forward.9}
  #allocation0 [shape = 'u32[]', space=smem, size = 0x4, offset = 0x4, fixed_abs, tag = 'smem constant byte address 0x4 - core index']
  #allocation1 [shape = 'u32[72,128]{1,0:T(1,128)}', space=vmem, size = 0x9000, scoped, tag = 'internal scratch']
  %s0 = inlined_call_operand.vmem [shape: bf16[512,288], index: 0, kind: input, shape index: {}]
  %s1 = inlined_call_operand.vmem [shape: bf16[288,8], index: 1, kind: input, shape index: {}]
  %s2 = inlined_call_operand.vmem [shape: f32[1,8], index: 2, kind: input, shape index: {}]
  %s3 = inlined_call_operand.vmem [shape: bf16[512,8], index: 3, kind: input, shape index: {}]
  %s4 = inlined_call_operand.vmem [shape: f32[512,8], index: 4, kind: output, shape index: {}]
  %s5 = sld [smem:[#allocation0]]
  $region49: #{cdc1_forward.9} parent=0
    _
  %s7 = ssub.s32 1, %s5
  %s8 = scalar_select 0, %s7, %s5
  loop: start=0, step=1, limit=4
  $region2: #{cdc1_forward.9} parent=0 // loop_pre_header
    _
  $region3: #{cdc1_forward.9} parent=0 // loop_header
    %s10 = sphi 0, %s14
    %p11 = scmp.ge.s32.totalorder %s10, 4
    %s20 = sphi 0, %s22
    %s23 = sphi 0, %s20
    %s24 = sphi 0, %s23
    %s40 = sphi 0, %s24
    %s44 = sphi 0, %s44
    %s46 = sphi 0, %s44
    %s47 = sphi 0, %s46
    %s61 = sphi 0, %s47
    %s65 = sphi 0, %s65
    %s67 = sphi 0, %s65
    %s68 = sphi 0, %s67
    %s82 = sphi 0, %s68
    %s88 = sphi 0, %s90
    %s91 = sphi 0, %s88
    %s92 = sphi 0, %s91
    %s108 = sphi 0, %s92
    %s114 = sphi 0, %s116
    %s117 = sphi 0, %s114
    %s118 = sphi 0, %s117
    %s134 = sphi 0, %s118
  $region4: #{cdc1_forward.9} parent=0 // loop_header_branch
    %13 = sbr.rel (%p11) target = $region8
  $region5: #{cdc1_forward.9} parent=0 // loop_body
    %s15 = ssub.s32 %s10, 1
    %s16 = ssub.s32 %s10, 2
    %s17 = sadd.s32 %s10, 1
    %s18 = ssub.s32 %s10, %s17
    %p19 = scmp.eq.s32.totalorder %s18, 0
    %s21 = sadd.s32 %s20, 1
    %s22 = scalar_select %p19, %s20, %s21
    %p25 = pneg %p19
    %p26 = scmp.eq.s32.totalorder %s10, 1
    %p27 = por %p25, %p26
    %p28 = scmp.ne.s32.totalorder %s20, %s23
    %p29 = scmp.eq.s32.totalorder %s10, 0
    %p30 = por %p28, %p29
    %p31 = scmp.ne.s32.totalorder %s20, %s23
    %p32 = scmp.eq.s32.totalorder %s15, 1
    %p33 = por %p31, %p32
    %p34 = scmp.ne.s32.totalorder %s23, %s24
    %p35 = scmp.eq.s32.totalorder %s15, 0
    %p36 = por %p34, %p35
    %p37 = scmp.ne.s32.totalorder %s23, %s24
    %p38 = scmp.eq.s32.totalorder %s16, 1
    %p39 = por %p37, %p38
    %p41 = scmp.ne.s32.totalorder %s24, %s40
    %p42 = scmp.eq.s32.totalorder %s16, 0
    %p43 = por %p41, %p42
    %s45 = sadd.s32 %s44, 1
    %p48 = scmp.eq.s32.totalorder %s10, 1
    %p49 = scmp.ne.s32.totalorder %s44, %s46
    %p50 = scmp.eq.s32.totalorder %s10, 0
    %p51 = por %p49, %p50
    %p52 = scmp.ne.s32.totalorder %s44, %s46
    %p53 = scmp.eq.s32.totalorder %s15, 1
    %p54 = por %p52, %p53
    %p55 = scmp.ne.s32.totalorder %s46, %s47
    %p56 = scmp.eq.s32.totalorder %s15, 0
    %p57 = por %p55, %p56
    %p58 = scmp.ne.s32.totalorder %s46, %s47
    %p59 = scmp.eq.s32.totalorder %s16, 1
    %p60 = por %p58, %p59
    %p62 = scmp.ne.s32.totalorder %s47, %s61
    %p63 = scmp.eq.s32.totalorder %s16, 0
    %p64 = por %p62, %p63
    %s66 = sadd.s32 %s65, 1
    %p69 = scmp.eq.s32.totalorder %s10, 1
    %p70 = scmp.ne.s32.totalorder %s65, %s67
    %p71 = scmp.eq.s32.totalorder %s10, 0
    %p72 = por %p70, %p71
    %p73 = scmp.ne.s32.totalorder %s65, %s67
    %p74 = scmp.eq.s32.totalorder %s15, 1
    %p75 = por %p73, %p74
    %p76 = scmp.ne.s32.totalorder %s67, %s68
    %p77 = scmp.eq.s32.totalorder %s15, 0
    %p78 = por %p76, %p77
    %p79 = scmp.ne.s32.totalorder %s67, %s68
    %p80 = scmp.eq.s32.totalorder %s16, 1
    %p81 = por %p79, %p80
    %p83 = scmp.ne.s32.totalorder %s68, %s82
    %p84 = scmp.eq.s32.totalorder %s16, 0
    %p85 = por %p83, %p84
    %s86 = ssub.s32 %s10, %s17
    %p87 = scmp.eq.s32.totalorder %s86, 0
    %s89 = sadd.s32 %s88, 1
    %s90 = scalar_select %p87, %s88, %s89
    %p93 = pneg %p87
    %p94 = scmp.eq.s32.totalorder %s10, 1
    %p95 = por %p93, %p94
    %p96 = scmp.ne.s32.totalorder %s88, %s91
    %p97 = scmp.eq.s32.totalorder %s10, 0
    %p98 = por %p96, %p97
    %p99 = scmp.ne.s32.totalorder %s88, %s91
    %p100 = scmp.eq.s32.totalorder %s15, 1
    %p101 = por %p99, %p100
    %p102 = scmp.ne.s32.totalorder %s91, %s92
    %p103 = scmp.eq.s32.totalorder %s15, 0
    %p104 = por %p102, %p103
    %p105 = scmp.ne.s32.totalorder %s91, %s92
    %p106 = scmp.eq.s32.totalorder %s16, 1
    %p107 = por %p105, %p106
    %p109 = scmp.ne.s32.totalorder %s92, %s108
    %p110 = scmp.eq.s32.totalorder %s16, 0
    %p111 = por %p109, %p110
    %s112 = ssub.s32 %s10, %s17
    %p113 = scmp.eq.s32.totalorder %s112, 0
    %s115 = sadd.s32 %s114, 1
    %s116 = scalar_select %p113, %s114, %s115
    %p119 = pneg %p113
    %p120 = scmp.eq.s32.totalorder %s10, 1
    %p121 = por %p119, %p120
    %p122 = scmp.ne.s32.totalorder %s114, %s117
    %p123 = scmp.eq.s32.totalorder %s10, 0
    %p124 = por %p122, %p123
    %p125 = scmp.ne.s32.totalorder %s114, %s117
    %p126 = scmp.eq.s32.totalorder %s15, 1
    %p127 = por %p125, %p126
    %p128 = scmp.ne.s32.totalorder %s117, %s118
    %p129 = scmp.eq.s32.totalorder %s15, 0
    %p130 = por %p128, %p129
    %p131 = scmp.ne.s32.totalorder %s117, %s118
    %p132 = scmp.eq.s32.totalorder %s16, 1
    %p133 = por %p131, %p132
    %p135 = scmp.ne.s32.totalorder %s118, %s134
    %p136 = scmp.eq.s32.totalorder %s16, 0
    %p137 = por %p135, %p136
    %p138 = scmp.le.s32.totalorder 1, %s10
    %p139 = scmp.lt.s32.totalorder %s10, 3
    %p140 = pnand %p138, %p139
    %p141 = pneg %p140
    // Predicated region
    $region9: #{cdc1_forward.9} parent=5 // pred_check
      _
    $region10: #{cdc1_forward.9} parent=5 // pred_check_branch
      %143 = sbr.rel (%p140) target = $region12
    $region11: #{cdc1_forward.9} parent=5 // pred_region
      %s144 = ssub.s32 %s10, 1
      // Predicated region
      $region13: #{cdc1_forward.9} parent=11 // pred_check
        %p145 = pneg %p57
      $region14: #{cdc1_forward.9} parent=11 // pred_check_branch
        %147 = sbr.rel (%p145) target = $region16
      $region15: #{cdc1_forward.9} parent=11 // pred_region
        _
      $region16: #{cdc1_forward.9} parent=11 // pred_fallthru
        _
      // Predicated region
      $region17: #{cdc1_forward.9} parent=11 // pred_check
        %p148 = pneg %p78
      $region18: #{cdc1_forward.9} parent=11 // pred_check_branch
        %150 = sbr.rel (%p148) target = $region20
      $region19: #{cdc1_forward.9} parent=11 // pred_region
        _
      $region20: #{cdc1_forward.9} parent=11 // pred_fallthru
        _
    $region12: #{cdc1_forward.9} parent=5 // pred_fallthru
      _
    %p151 = scmp.lt.s32.totalorder %s10, 2
    // Predicated region
    $region21: #{cdc1_forward.9} parent=5 // pred_check
      %p152 = pneg %p151
    $region22: #{cdc1_forward.9} parent=5 // pred_check_branch
      %154 = sbr.rel (%p152) target = $region24
    $region23: #{cdc1_forward.9} parent=5 // pred_region
      // Predicated region
      $region25: #{cdc1_forward.9} parent=23 // pred_check
        %p155 = pneg %p30
      $region26: #{cdc1_forward.9} parent=23 // pred_check_branch
        %157 = sbr.rel (%p155) target = $region28
      $region27: #{cdc1_forward.9} parent=23 // pred_region
        %s158 = smul.u32 32, %s10
        %p159 = scmp.lt.s32.totalorder %s158, 63
        %s160 = scalar_select %p159, %s158, 63
        %s161 = smul.addr %s160, 3
        %s162 = smul.addr %s161, 4
        %s163 = scalar_lea.vmem %s0, %s162
        %s164 = smul.u32 32, %s10
      $region28: #{cdc1_forward.9} parent=23 // pred_fallthru
        _
      // Predicated region
      $region29: #{cdc1_forward.9} parent=23 // pred_check
        %p165 = pneg %p98
      $region30: #{cdc1_forward.9} parent=23 // pred_check_branch
        %167 = sbr.rel (%p165) target = $region32
      $region31: #{cdc1_forward.9} parent=23 // pred_region
        %s168 = smul.u32 32, %s10
        %p169 = scmp.lt.s32.totalorder %s168, 63
        %s170 = scalar_select %p169, %s168, 63
        %s171 = smul.addr %s170, 4
        %s172 = scalar_lea.vmem %s3, %s171
        %s173 = smul.u32 32, %s10
      $region32: #{cdc1_forward.9} parent=23 // pred_fallthru
        _
    $region24: #{cdc1_forward.9} parent=5 // pred_fallthru
      _
    %p174 = scmp.le.s32.totalorder 1, %s10
    %p175 = scmp.lt.s32.totalorder %s10, 3
    %p176 = pnand %p174, %p175
    %p177 = pneg %p176
    // Predicated region
    $region33: #{cdc1_forward.9} parent=5 // pred_check
      _
    $region34: #{cdc1_forward.9} parent=5 // pred_check_branch
      %179 = sbr.rel (%p176) target = $region36
    $region35: #{cdc1_forward.9} parent=5 // pred_region
      %s180 = ssub.s32 %s10, 1
      %s181 = smul.u32 32, %s15
      %p182 = scmp.lt.s32.totalorder %s181, 63
      %s183 = scalar_select %p182, %s181, 63
      %s184 = smul.addr %s183, 3
      %s185 = smul.addr %s184, 4
      %s186 = scalar_lea.vmem %s0, %s185
      %p187 = pneg %p36
      %p188 = pneg %p33
      %p189 = pneg %p57
      %p190 = pneg %p54
      %p191 = pneg %p78
      %p192 = pneg %p75
      %s193 = smul.u32 32, %s15
      %p194 = scmp.lt.s32.totalorder %s193, 63
      %s195 = scalar_select %p194, %s193, 63
      %s196 = smul.addr %s195, 4
      %s197 = scalar_lea.vmem %s3, %s196
      %p198 = pneg %p104
      %p199 = pneg %p101
      %p200 = pneg %p130
      %p201 = pneg %p127
      %s202 = smul.u32 32, %s15
      %p203 = scmp.lt.s32.totalorder %s202, 63
      %s204 = scalar_select %p203, %s202, 63
      %s205 = smul.addr %s204, 8
      %s206 = scalar_lea.vmem %s4, %s205
      %s207 = smul.u32 32, %s15
      %p208 = scmp.lt.s32.totalorder %s207, 63
      %s209 = scalar_select %p208, %s207, 63
      %s210 = smul.addr %s209, 3
      %s211 = smul.addr %s210, 4
      %s212 = scalar_lea.vmem %s0, %s211
      %s213 = smul.u32 32, %s15
      %s214 = smul.u32 32, %s15
      %p215 = scmp.lt.s32.totalorder %s214, 63
      %s216 = scalar_select %p215, %s214, 63
      %s217 = smul.addr %s216, 4
      %s218 = scalar_lea.vmem %s3, %s217
      %s219 = smul.u32 32, %s15
      %s220 = smul.u32 32, %s15
      %p221 = scmp.lt.s32.totalorder %s220, 63
      %s222 = scalar_select %p221, %s220, 63
      %s223 = smul.addr %s222, 8
      %s224 = scalar_lea.vmem %s4, %s223
      %s225 = smul.u32 32, %s15
      %v227 = vld [vmem:[%s212] sm:$0xff]
      %v228 = vld [vmem:[%s212 + $0x8] sm:$0xf]
      %v229 = vld [vmem:[%s212 + $0xc] sm:$0xff]
      %v230 = vld [vmem:[%s212 + $0x14] sm:$0xf]
      %v231 = vld [vmem:[%s212 + $0x18] sm:$0xff]
      %v232 = vld [vmem:[%s212 + $0x20] sm:$0xf]
      %v233 = vld [vmem:[%s212 + $0x24] sm:$0xff]
      %v234 = vld [vmem:[%s212 + $0x2c] sm:$0xf]
      %v235 = vld [vmem:[%s212 + $0x30] sm:$0xff]
      %v236 = vld [vmem:[%s212 + $0x38] sm:$0xf]
      %v237 = vld [vmem:[%s212 + $0x3c] sm:$0xff]
      %v238 = vld [vmem:[%s212 + $0x44] sm:$0xf]
      %v239 = vld [vmem:[%s212 + $0x48] sm:$0xff]
      %v240 = vld [vmem:[%s212 + $0x50] sm:$0xf]
      %v241 = vld [vmem:[%s212 + $0x54] sm:$0xff]
      %v242 = vld [vmem:[%s212 + $0x5c] sm:$0xf]
      %v243 = vld [vmem:[%s212 + $0x60] sm:$0xff]
      %v244 = vld [vmem:[%s212 + $0x68] sm:$0xf]
      %v245 = vld [vmem:[%s212 + $0x6c] sm:$0xff]
      %v246 = vld [vmem:[%s212 + $0x74] sm:$0xf]
      %v247 = vld [vmem:[%s212 + $0x78] sm:$0xff]
      %v248 = vld [vmem:[%s212 + $0x80] sm:$0xf]
      %v249 = vld [vmem:[%s212 + $0x84] sm:$0xff]
      %v250 = vld [vmem:[%s212 + $0x8c] sm:$0xf]
      %v251 = vld [vmem:[%s212 + $0x90] sm:$0xff]
      %v252 = vld [vmem:[%s212 + $0x98] sm:$0xf]
      %v253 = vld [vmem:[%s212 + $0x9c] sm:$0xff]
      %v254 = vld [vmem:[%s212 + $0xa4] sm:$0xf]
      %v255 = vld [vmem:[%s212 + $0xa8] sm:$0xff]
      %v256 = vld [vmem:[%s212 + $0xb0] sm:$0xf]
      %v257 = vld [vmem:[%s212 + $0xb4] sm:$0xff]
      %v258 = vld [vmem:[%s212 + $0xbc] sm:$0xf]
      %v259 = vld [vmem:[%s212 + $0xc0] sm:$0xff]
      %v260 = vld [vmem:[%s212 + $0xc8] sm:$0xf]
      %v261 = vld [vmem:[%s212 + $0xcc] sm:$0xff]
      %v262 = vld [vmem:[%s212 + $0xd4] sm:$0xf]
      %v263 = vld [vmem:[%s212 + $0xd8] sm:$0xff]
      %v264 = vld [vmem:[%s212 + $0xe0] sm:$0xf]
      %v265 = vld [vmem:[%s212 + $0xe4] sm:$0xff]
      %v266 = vld [vmem:[%s212 + $0xec] sm:$0xf]
      %v267 = vld [vmem:[%s212 + $0xf0] sm:$0xff]
      %v268 = vld [vmem:[%s212 + $0xf8] sm:$0xf]
      %v269 = vld [vmem:[%s212 + $0xfc] sm:$0xff]
      %v270 = vld [vmem:[%s212 + $0x104] sm:$0xf]
      %v271 = vld [vmem:[%s212 + $0x108] sm:$0xff]
      %v272 = vld [vmem:[%s212 + $0x110] sm:$0xf]
      %v273 = vld [vmem:[%s212 + $0x114] sm:$0xff]
      %v274 = vld [vmem:[%s212 + $0x11c] sm:$0xf]
      %v275 = vld [vmem:[%s212 + $0x120] sm:$0xff]
      %v276 = vld [vmem:[%s212 + $0x128] sm:$0xf]
      %v277 = vld [vmem:[%s212 + $0x12c] sm:$0xff]
      %v278 = vld [vmem:[%s212 + $0x134] sm:$0xf]
      %v279 = vld [vmem:[%s212 + $0x138] sm:$0xff]
      %v280 = vld [vmem:[%s212 + $0x140] sm:$0xf]
      %v281 = vld [vmem:[%s212 + $0x144] sm:$0xff]
      %v282 = vld [vmem:[%s212 + $0x14c] sm:$0xf]
      %v283 = vld [vmem:[%s212 + $0x150] sm:$0xff]
      %v284 = vld [vmem:[%s212 + $0x158] sm:$0xf]
      %v285 = vld [vmem:[%s212 + $0x15c] sm:$0xff]
      %v286 = vld [vmem:[%s212 + $0x164] sm:$0xf]
      %v287 = vld [vmem:[%s212 + $0x168] sm:$0xff]
      %v288 = vld [vmem:[%s212 + $0x170] sm:$0xf]
      %v289 = vld [vmem:[%s212 + $0x174] sm:$0xff]
      %v290 = vld [vmem:[%s212 + $0x17c] sm:$0xf]
      %v291 = vld [vmem:[%s1] sm:$0xf]
      %v292 = vld [vmem:[%s1 + $0x4] sm:$0xf]
      %v293 = vld [vmem:[%s1 + $0x8] sm:$0xf]
      %v294 = vld [vmem:[%s1 + $0xc] sm:$0xf]
      %v295 = vld [vmem:[%s1 + $0x10] sm:$0xf]
      %v296 = vld [vmem:[%s1 + $0x14] sm:$0xf]
      %v297 = vld [vmem:[%s1 + $0x18] sm:$0xf]
      %v298 = vld [vmem:[%s1 + $0x1c] sm:$0xf]
      %v299 = vld [vmem:[%s1 + $0x20] sm:$0xf]
      %v300 = vld [vmem:[%s1 + $0x24] sm:$0xf]
      %v301 = vld [vmem:[%s1 + $0x28] sm:$0xf]
      %v302 = vld [vmem:[%s1 + $0x2c] sm:$0xf]
      %v303 = vld [vmem:[%s1 + $0x30] sm:$0xf]
      %v304 = vld [vmem:[%s1 + $0x34] sm:$0xf]
      %v305 = vld [vmem:[%s1 + $0x38] sm:$0xf]
      %v306 = vld [vmem:[%s1 + $0x3c] sm:$0xf]
      %v307 = vld [vmem:[%s1 + $0x40] sm:$0xf]
      %v308 = vld [vmem:[%s1 + $0x44] sm:$0xf]
      %v309 = vld [vmem:[%s1 + $0x48] sm:$0xf]
      %v310 = vld [vmem:[%s1 + $0x4c] sm:$0xf]
      %v311 = vld [vmem:[%s1 + $0x50] sm:$0xf]
      %v312 = vld [vmem:[%s1 + $0x54] sm:$0xf]
      %v313 = vld [vmem:[%s1 + $0x58] sm:$0xf]
      %v314 = vld [vmem:[%s1 + $0x5c] sm:$0xf]
      %v315 = vld [vmem:[%s1 + $0x60] sm:$0xf]
      %v316 = vld [vmem:[%s1 + $0x64] sm:$0xf]
      %v317 = vld [vmem:[%s1 + $0x68] sm:$0xf]
      %v318 = vld [vmem:[%s1 + $0x6c] sm:$0xf]
      %v319 = vld [vmem:[%s1 + $0x70] sm:$0xf]
      %v320 = vld [vmem:[%s1 + $0x74] sm:$0xf]
      %v321 = vld [vmem:[%s1 + $0x78] sm:$0xf]
      %v322 = vld [vmem:[%s1 + $0x7c] sm:$0xf]
      %v323 = vld [vmem:[%s1 + $0x80] sm:$0xf]
      %v324 = vld [vmem:[%s1 + $0x84] sm:$0xf]
      %v325 = vld [vmem:[%s1 + $0x88] sm:$0xf]
      %v326 = vld [vmem:[%s1 + $0x8c] sm:$0xf]
      %v327 = vld [vmem:[%s2] sm:$0x1]
      %v329 = vperm.slane %v327, 0
      %v395 = vunpack.c.l.b16 %v227
      %v396 = vunpack.c.h.b16 %v227
      %v397 = vunpack.c.l.b16 %v228
      %v398 = vunpack.c.l.b16 %v229
      %v399 = vunpack.c.h.b16 %v229
      %v400 = vunpack.c.l.b16 %v230
      %v401 = vunpack.c.l.b16 %v231
      %v402 = vunpack.c.h.b16 %v231
      %v403 = vunpack.c.l.b16 %v232
      %v404 = vunpack.c.l.b16 %v233
      %v405 = vunpack.c.h.b16 %v233
      %v406 = vunpack.c.l.b16 %v234
      %v407 = vunpack.c.l.b16 %v235
      %v408 = vunpack.c.h.b16 %v235
      %v409 = vunpack.c.l.b16 %v236
      %v410 = vunpack.c.l.b16 %v237
      %v411 = vunpack.c.h.b16 %v237
      %v412 = vunpack.c.l.b16 %v238
      %v413 = vunpack.c.l.b16 %v239
      %v414 = vunpack.c.h.b16 %v239
      %v415 = vunpack.c.l.b16 %v240
      %v416 = vunpack.c.l.b16 %v241
      %v417 = vunpack.c.h.b16 %v241
      %v418 = vunpack.c.l.b16 %v242
      %v419 = vunpack.c.l.b16 %v243
      %v420 = vunpack.c.h.b16 %v243
      %v421 = vunpack.c.l.b16 %v244
      %v422 = vunpack.c.l.b16 %v245
      %v423 = vunpack.c.h.b16 %v245
      %v424 = vunpack.c.l.b16 %v246
      %v425 = vunpack.c.l.b16 %v247
      %v426 = vunpack.c.h.b16 %v247
      %v427 = vunpack.c.l.b16 %v248
      %v428 = vunpack.c.l.b16 %v249
      %v429 = vunpack.c.h.b16 %v249
      %v430 = vunpack.c.l.b16 %v250
      %v431 = vunpack.c.l.b16 %v251
      %v432 = vunpack.c.h.b16 %v251
      %v433 = vunpack.c.l.b16 %v252
      %v434 = vunpack.c.l.b16 %v253
      %v435 = vunpack.c.h.b16 %v253
      %v436 = vunpack.c.l.b16 %v254
      %v437 = vunpack.c.l.b16 %v255
      %v438 = vunpack.c.h.b16 %v255
      %v439 = vunpack.c.l.b16 %v256
      %v440 = vunpack.c.l.b16 %v257
      %v441 = vunpack.c.h.b16 %v257
      %v442 = vunpack.c.l.b16 %v258
      %v443 = vunpack.c.l.b16 %v259
      %v444 = vunpack.c.h.b16 %v259
      %v445 = vunpack.c.l.b16 %v260
      %v446 = vunpack.c.l.b16 %v261
      %v447 = vunpack.c.h.b16 %v261
      %v448 = vunpack.c.l.b16 %v262
      %v449 = vunpack.c.l.b16 %v263
      %v450 = vunpack.c.h.b16 %v263
      %v451 = vunpack.c.l.b16 %v264
      %v452 = vunpack.c.l.b16 %v265
      %v453 = vunpack.c.h.b16 %v265
      %v454 = vunpack.c.l.b16 %v266
      %v455 = vunpack.c.l.b16 %v267
      %v456 = vunpack.c.h.b16 %v267
      %v457 = vunpack.c.l.b16 %v268
      %v458 = vunpack.c.l.b16 %v269
      %v459 = vunpack.c.h.b16 %v269
      %v460 = vunpack.c.l.b16 %v270
      %v461 = vunpack.c.l.b16 %v271
      %v462 = vunpack.c.h.b16 %v271
      %v463 = vunpack.c.l.b16 %v272
      %v464 = vunpack.c.l.b16 %v273
      %v465 = vunpack.c.h.b16 %v273
      %v466 = vunpack.c.l.b16 %v274
      %v467 = vunpack.c.l.b16 %v275
      %v468 = vunpack.c.h.b16 %v275
      %v469 = vunpack.c.l.b16 %v276
      %v470 = vunpack.c.l.b16 %v277
      %v471 = vunpack.c.h.b16 %v277
      %v472 = vunpack.c.l.b16 %v278
      %v473 = vunpack.c.l.b16 %v279
      %v474 = vunpack.c.h.b16 %v279
      %v475 = vunpack.c.l.b16 %v280
      %v476 = vunpack.c.l.b16 %v281
      %v477 = vunpack.c.h.b16 %v281
      %v478 = vunpack.c.l.b16 %v282
      %v479 = vunpack.c.l.b16 %v283
      %v480 = vunpack.c.h.b16 %v283
      %v481 = vunpack.c.l.b16 %v284
      %v482 = vunpack.c.l.b16 %v285
      %v483 = vunpack.c.h.b16 %v285
      %v484 = vunpack.c.l.b16 %v286
      %v485 = vunpack.c.l.b16 %v287
      %v486 = vunpack.c.h.b16 %v287
      %v487 = vunpack.c.l.b16 %v288
      %v488 = vunpack.c.l.b16 %v289
      %v489 = vunpack.c.h.b16 %v289
      %v490 = vunpack.c.l.b16 %v290
      %v491 = vpack.c.b16 %v398, %v395
      %v492 = vpack.c.b16 %v399, %v396
      %v493 = vpack.c.b16 %v400, %v397
      %v494 = vpack.c.b16 %v404, %v401
      %v495 = vpack.c.b16 %v405, %v402
      %v496 = vpack.c.b16 %v406, %v403
      %v497 = vpack.c.b16 %v410, %v407
      %v498 = vpack.c.b16 %v411, %v408
      %v499 = vpack.c.b16 %v412, %v409
      %v500 = vpack.c.b16 %v416, %v413
      %v501 = vpack.c.b16 %v417, %v414
      %v502 = vpack.c.b16 %v418, %v415
      %v503 = vpack.c.b16 %v422, %v419
      %v504 = vpack.c.b16 %v423, %v420
      %v505 = vpack.c.b16 %v424, %v421
      %v506 = vpack.c.b16 %v428, %v425
      %v507 = vpack.c.b16 %v429, %v426
      %v508 = vpack.c.b16 %v430, %v427
      %v509 = vpack.c.b16 %v434, %v431
      %v510 = vpack.c.b16 %v435, %v432
      %v511 = vpack.c.b16 %v436, %v433
      %v512 = vpack.c.b16 %v440, %v437
      %v513 = vpack.c.b16 %v441, %v438
      %v514 = vpack.c.b16 %v442, %v439
      %v515 = vpack.c.b16 %v446, %v443
      %v516 = vpack.c.b16 %v447, %v444
      %v517 = vpack.c.b16 %v448, %v445
      %v518 = vpack.c.b16 %v452, %v449
      %v519 = vpack.c.b16 %v453, %v450
      %v520 = vpack.c.b16 %v454, %v451
      %v521 = vpack.c.b16 %v458, %v455
      %v522 = vpack.c.b16 %v459, %v456
      %v523 = vpack.c.b16 %v460, %v457
      %v524 = vpack.c.b16 %v464, %v461
      %v525 = vpack.c.b16 %v465, %v462
      %v526 = vpack.c.b16 %v466, %v463
      %v527 = vpack.c.b16 %v470, %v467
      %v528 = vpack.c.b16 %v471, %v468
      %v529 = vpack.c.b16 %v472, %v469
      %v530 = vpack.c.b16 %v476, %v473
      %v531 = vpack.c.b16 %v477, %v474
      %v532 = vpack.c.b16 %v478, %v475
      %v533 = vpack.c.b16 %v482, %v479
      %v534 = vpack.c.b16 %v483, %v480
      %v535 = vpack.c.b16 %v484, %v481
      %v536 = vpack.c.b16 %v488, %v485
      %v537 = vpack.c.b16 %v489, %v486
      %v538 = vpack.c.b16 %v490, %v487
      %v607 = vunpack.c.l.b16 %v291
      %v608 = vunpack.c.l.b16 %v292
      %v609 = vunpack.c.l.b16 %v293
      %v610 = vunpack.c.l.b16 %v294
      %v611 = vunpack.c.l.b16 %v295
      %v612 = vunpack.c.l.b16 %v296
      %v613 = vunpack.c.l.b16 %v297
      %v614 = vunpack.c.l.b16 %v298
      %v615 = vunpack.c.l.b16 %v299
      %v616 = vunpack.c.l.b16 %v300
      %v617 = vunpack.c.l.b16 %v301
      %v618 = vunpack.c.l.b16 %v302
      %v619 = vunpack.c.l.b16 %v303
      %v620 = vunpack.c.l.b16 %v304
      %v621 = vunpack.c.l.b16 %v305
      %v622 = vunpack.c.l.b16 %v306
      %v623 = vunpack.c.l.b16 %v307
      %v624 = vunpack.c.l.b16 %v308
      %v625 = vunpack.c.l.b16 %v309
      %v626 = vunpack.c.l.b16 %v310
      %v627 = vunpack.c.l.b16 %v311
      %v628 = vunpack.c.l.b16 %v312
      %v629 = vunpack.c.l.b16 %v313
      %v630 = vunpack.c.l.b16 %v314
      %v631 = vunpack.c.l.b16 %v315
      %v632 = vunpack.c.l.b16 %v316
      %v633 = vunpack.c.l.b16 %v317
      %v634 = vunpack.c.l.b16 %v318
      %v635 = vunpack.c.l.b16 %v319
      %v636 = vunpack.c.l.b16 %v320
      %v637 = vunpack.c.l.b16 %v321
      %v638 = vunpack.c.l.b16 %v322
      %v639 = vunpack.c.l.b16 %v323
      %v640 = vunpack.c.l.b16 %v324
      %v641 = vunpack.c.l.b16 %v325
      %v642 = vunpack.c.l.b16 %v326
      %v643 = vpack.c.b16 %v608, %v607
      %v644 = vpack.c.b16 %v610, %v609
      %v645 = vpack.c.b16 %v612, %v611
      %v646 = vpack.c.b16 %v614, %v613
      %v647 = vpack.c.b16 %v616, %v615
      %v648 = vpack.c.b16 %v618, %v617
      %v649 = vpack.c.b16 %v620, %v619
      %v650 = vpack.c.b16 %v622, %v621
      %v651 = vpack.c.b16 %v624, %v623
      %v652 = vpack.c.b16 %v626, %v625
      %v653 = vpack.c.b16 %v628, %v627
      %v654 = vpack.c.b16 %v630, %v629
      %v655 = vpack.c.b16 %v632, %v631
      %v656 = vpack.c.b16 %v634, %v633
      %v657 = vpack.c.b16 %v636, %v635
      %v658 = vpack.c.b16 %v638, %v637
      %v659 = vpack.c.b16 %v640, %v639
      %v660 = vpack.c.b16 %v642, %v641
      %vm679 = vcmask 261120
      %v681 = vsel %vm679, %v493, 0
      %v684 = vsel %vm679, %v496, 0
      %v687 = vsel %vm679, %v499, 0
      %v690 = vsel %vm679, %v502, 0
      %v693 = vsel %vm679, %v505, 0
      %v696 = vsel %vm679, %v508, 0
      %v699 = vsel %vm679, %v511, 0
      %v702 = vsel %vm679, %v514, 0
      %v705 = vsel %vm679, %v517, 0
      %v708 = vsel %vm679, %v520, 0
      %v711 = vsel %vm679, %v523, 0
      %v714 = vsel %vm679, %v526, 0
      %v717 = vsel %vm679, %v529, 0
      %v720 = vsel %vm679, %v532, 0
      %v723 = vsel %vm679, %v535, 0
      %v726 = vsel %vm679, %v538, 0
      %728 = vmatpush.bf16.msra.mxu0 %v650
      %729 = vmatpush.bf16.msra.mxu0 %v649
      %730 = vmatpush.bf16.msra.mxu0 %v648
      %731 = vmatpush.bf16.msra.mxu0 %v647
      %732 = vmatpush.bf16.msra.mxu0 %v646
      %733 = vmatpush.bf16.msra.mxu0 %v645
      %734 = vmatpush.bf16.msra.mxu0 %v644
      %735 = vmatpush.bf16.msra.mxu0 %v643
      %736 = vmatmul.bf16.gmra.mxu0 %v491
      %v737 = vpop.f32.mrf.mxu0
      %v738 = vadd.f32 %v329, %v737
      %v739 = vpop.f32.mrf.mxu0
      %v740 = vadd.f32 %v329, %v739
      %741 = vmatmul.bf16.gmra.mxu0 %v494
      %v742 = vpop.f32.mrf.mxu0
      %v743 = vadd.f32 %v329, %v742
      %v744 = vpop.f32.mrf.mxu0
      %v745 = vadd.f32 %v329, %v744
      %746 = vmatmul.bf16.gmra.mxu0 %v497
      %v747 = vpop.f32.mrf.mxu0
      %v748 = vadd.f32 %v329, %v747
      %v749 = vpop.f32.mrf.mxu0
      %v750 = vadd.f32 %v329, %v749
      %751 = vmatmul.bf16.gmra.mxu0 %v500
      %v752 = vpop.f32.mrf.mxu0
      %v753 = vadd.f32 %v329, %v752
      %v754 = vpop.f32.mrf.mxu0
      %v755 = vadd.f32 %v329, %v754
      %756 = vmatmul.bf16.gmra.mxu0 %v503
      %v757 = vpop.f32.mrf.mxu0
      %v758 = vadd.f32 %v329, %v757
      %v759 = vpop.f32.mrf.mxu0
      %v760 = vadd.f32 %v329, %v759
      %761 = vmatmul.bf16.gmra.mxu0 %v506
      %v762 = vpop.f32.mrf.mxu0
      %v763 = vadd.f32 %v329, %v762
      %v764 = vpop.f32.mrf.mxu0
      %v765 = vadd.f32 %v329, %v764
      %766 = vmatmul.bf16.gmra.mxu0 %v509
      %v767 = vpop.f32.mrf.mxu0
      %v768 = vadd.f32 %v329, %v767
      %v769 = vpop.f32.mrf.mxu0
      %v770 = vadd.f32 %v329, %v769
      %771 = vmatmul.bf16.gmra.mxu0 %v512
      %v772 = vpop.f32.mrf.mxu0
      %v773 = vadd.f32 %v329, %v772
      %v774 = vpop.f32.mrf.mxu0
      %v775 = vadd.f32 %v329, %v774
      %776 = vmatmul.bf16.gmra.mxu0 %v515
      %v777 = vpop.f32.mrf.mxu0
      %v778 = vadd.f32 %v329, %v777
      %v779 = vpop.f32.mrf.mxu0
      %v780 = vadd.f32 %v329, %v779
      %781 = vmatmul.bf16.gmra.mxu0 %v518
      %v782 = vpop.f32.mrf.mxu0
      %v783 = vadd.f32 %v329, %v782
      %v784 = vpop.f32.mrf.mxu0
      %v785 = vadd.f32 %v329, %v784
      %786 = vmatmul.bf16.gmra.mxu0 %v521
      %v787 = vpop.f32.mrf.mxu0
      %v788 = vadd.f32 %v329, %v787
      %v789 = vpop.f32.mrf.mxu0
      %v790 = vadd.f32 %v329, %v789
      %791 = vmatmul.bf16.gmra.mxu0 %v524
      %v792 = vpop.f32.mrf.mxu0
      %v793 = vadd.f32 %v329, %v792
      %v794 = vpop.f32.mrf.mxu0
      %v795 = vadd.f32 %v329, %v794
      %796 = vmatmul.bf16.gmra.mxu0 %v527
      %v797 = vpop.f32.mrf.mxu0
      %v798 = vadd.f32 %v329, %v797
      %v799 = vpop.f32.mrf.mxu0
      %v800 = vadd.f32 %v329, %v799
      %801 = vmatmul.bf16.gmra.mxu0 %v530
      %v802 = vpop.f32.mrf.mxu0
      %v803 = vadd.f32 %v329, %v802
      %v804 = vpop.f32.mrf.mxu0
      %v805 = vadd.f32 %v329, %v804
      %806 = vmatmul.bf16.gmra.mxu0 %v533
      %v807 = vpop.f32.mrf.mxu0
      %v808 = vadd.f32 %v329, %v807
      %v809 = vpop.f32.mrf.mxu0
      %v810 = vadd.f32 %v329, %v809
      %811 = vmatmul.bf16.gmra.mxu0 %v536
      %v812 = vpop.f32.mrf.mxu0
      %v813 = vadd.f32 %v329, %v812
      %v814 = vpop.f32.mrf.mxu0
      %v815 = vadd.f32 %v329, %v814
      %816 = vdwg.mxu0
      %817 = vmatpush.bf16.msra.mxu0 %v658
      %818 = vmatpush.bf16.msra.mxu0 %v657
      %819 = vmatpush.bf16.msra.mxu0 %v656
      %820 = vmatpush.bf16.msra.mxu0 %v655
      %821 = vmatpush.bf16.msra.mxu0 %v654
      %822 = vmatpush.bf16.msra.mxu0 %v653
      %823 = vmatpush.bf16.msra.mxu0 %v652
      %824 = vmatpush.bf16.msra.mxu0 %v651
      %825 = vmatmul.bf16.gmra.mxu0 %v492
      %v826 = vpop.f32.mrf.mxu0
      %v827 = vadd.f32 %v738, %v826
      %v828 = vpop.f32.mrf.mxu0
      %v829 = vadd.f32 %v740, %v828
      %830 = vmatmul.bf16.gmra.mxu0 %v495
      %v831 = vpop.f32.mrf.mxu0
      %v832 = vadd.f32 %v743, %v831
      %v833 = vpop.f32.mrf.mxu0
      %v834 = vadd.f32 %v745, %v833
      %835 = vmatmul.bf16.gmra.mxu0 %v498
      %v836 = vpop.f32.mrf.mxu0
      %v837 = vadd.f32 %v748, %v836
      %v838 = vpop.f32.mrf.mxu0
      %v839 = vadd.f32 %v750, %v838
      %840 = vmatmul.bf16.gmra.mxu0 %v501
      %v841 = vpop.f32.mrf.mxu0
      %v842 = vadd.f32 %v753, %v841
      %v843 = vpop.f32.mrf.mxu0
      %v844 = vadd.f32 %v755, %v843
      %845 = vmatmul.bf16.gmra.mxu0 %v504
      %v846 = vpop.f32.mrf.mxu0
      %v847 = vadd.f32 %v758, %v846
      %v848 = vpop.f32.mrf.mxu0
      %v849 = vadd.f32 %v760, %v848
      %850 = vmatmul.bf16.gmra.mxu0 %v507
      %v851 = vpop.f32.mrf.mxu0
      %v852 = vadd.f32 %v763, %v851
      %v853 = vpop.f32.mrf.mxu0
      %v854 = vadd.f32 %v765, %v853
      %855 = vmatmul.bf16.gmra.mxu0 %v510
      %v856 = vpop.f32.mrf.mxu0
      %v857 = vadd.f32 %v768, %v856
      %v858 = vpop.f32.mrf.mxu0
      %v859 = vadd.f32 %v770, %v858
      %860 = vmatmul.bf16.gmra.mxu0 %v513
      %v861 = vpop.f32.mrf.mxu0
      %v862 = vadd.f32 %v773, %v861
      %v863 = vpop.f32.mrf.mxu0
      %v864 = vadd.f32 %v775, %v863
      %865 = vmatmul.bf16.gmra.mxu0 %v516
      %v866 = vpop.f32.mrf.mxu0
      %v867 = vadd.f32 %v778, %v866
      %v868 = vpop.f32.mrf.mxu0
      %v869 = vadd.f32 %v780, %v868
      %870 = vmatmul.bf16.gmra.mxu0 %v519
      %v871 = vpop.f32.mrf.mxu0
      %v872 = vadd.f32 %v783, %v871
      %v873 = vpop.f32.mrf.mxu0
      %v874 = vadd.f32 %v785, %v873
      %875 = vmatmul.bf16.gmra.mxu0 %v522
      %v876 = vpop.f32.mrf.mxu0
      %v877 = vadd.f32 %v788, %v876
      %v878 = vpop.f32.mrf.mxu0
      %v879 = vadd.f32 %v790, %v878
      %880 = vmatmul.bf16.gmra.mxu0 %v525
      %v881 = vpop.f32.mrf.mxu0
      %v882 = vadd.f32 %v793, %v881
      %v883 = vpop.f32.mrf.mxu0
      %v884 = vadd.f32 %v795, %v883
      %885 = vmatmul.bf16.gmra.mxu0 %v528
      %v886 = vpop.f32.mrf.mxu0
      %v887 = vadd.f32 %v798, %v886
      %v888 = vpop.f32.mrf.mxu0
      %v889 = vadd.f32 %v800, %v888
      %890 = vmatmul.bf16.gmra.mxu0 %v531
      %v891 = vpop.f32.mrf.mxu0
      %v892 = vadd.f32 %v803, %v891
      %v893 = vpop.f32.mrf.mxu0
      %v894 = vadd.f32 %v805, %v893
      %895 = vmatmul.bf16.gmra.mxu0 %v534
      %v896 = vpop.f32.mrf.mxu0
      %v897 = vadd.f32 %v808, %v896
      %v898 = vpop.f32.mrf.mxu0
      %v899 = vadd.f32 %v810, %v898
      %900 = vmatmul.bf16.gmra.mxu0 %v537
      %v901 = vpop.f32.mrf.mxu0
      %v902 = vadd.f32 %v813, %v901
      %v903 = vpop.f32.mrf.mxu0
      %v904 = vadd.f32 %v815, %v903
      %905 = vdwg.mxu0
      %906 = vmatpush.bf16.msra.mxu0 0
      %907 = vmatpush.bf16.msra.mxu0 0
      %908 = vmatpush.bf16.msra.mxu0 0
      %909 = vmatpush.bf16.msra.mxu0 0
      %910 = vmatpush.bf16.msra.mxu0 0
      %911 = vmatpush.bf16.msra.mxu0 0
      %912 = vmatpush.bf16.msra.mxu0 %v660
      %913 = vmatpush.bf16.msra.mxu0 %v659
      %914 = vmatmul.bf16.gmra.mxu0 %v681
      %v915 = vpop.f32.mrf.mxu0
      %v916 = vadd.f32 %v827, %v915
      %v917 = vpop.f32.mrf.mxu0
      %v918 = vadd.f32 %v829, %v917
      %919 = vmatmul.bf16.gmra.mxu0 %v684
      %v920 = vpop.f32.mrf.mxu0
      %v921 = vadd.f32 %v832, %v920
      %v922 = vpop.f32.mrf.mxu0
      %v923 = vadd.f32 %v834, %v922
      %924 = vmatmul.bf16.gmra.mxu0 %v687
      %v925 = vpop.f32.mrf.mxu0
      %v926 = vadd.f32 %v837, %v925
      %v927 = vpop.f32.mrf.mxu0
      %v928 = vadd.f32 %v839, %v927
      %929 = vmatmul.bf16.gmra.mxu0 %v690
      %v930 = vpop.f32.mrf.mxu0
      %v931 = vadd.f32 %v842, %v930
      %v932 = vpop.f32.mrf.mxu0
      %v933 = vadd.f32 %v844, %v932
      %934 = vmatmul.bf16.gmra.mxu0 %v693
      %v935 = vpop.f32.mrf.mxu0
      %v936 = vadd.f32 %v847, %v935
      %v937 = vpop.f32.mrf.mxu0
      %v938 = vadd.f32 %v849, %v937
      %939 = vmatmul.bf16.gmra.mxu0 %v696
      %v940 = vpop.f32.mrf.mxu0
      %v941 = vadd.f32 %v852, %v940
      %v942 = vpop.f32.mrf.mxu0
      %v943 = vadd.f32 %v854, %v942
      %944 = vmatmul.bf16.gmra.mxu0 %v699
      %v945 = vpop.f32.mrf.mxu0
      %v946 = vadd.f32 %v857, %v945
      %v947 = vpop.f32.mrf.mxu0
      %v948 = vadd.f32 %v859, %v947
      %949 = vmatmul.bf16.gmra.mxu0 %v702
      %v950 = vpop.f32.mrf.mxu0
      %v951 = vadd.f32 %v862, %v950
      %v952 = vpop.f32.mrf.mxu0
      %v953 = vadd.f32 %v864, %v952
      %954 = vmatmul.bf16.gmra.mxu0 %v705
      %v955 = vpop.f32.mrf.mxu0
      %v956 = vadd.f32 %v867, %v955
      %v957 = vpop.f32.mrf.mxu0
      %v958 = vadd.f32 %v869, %v957
      %959 = vmatmul.bf16.gmra.mxu0 %v708
      %v960 = vpop.f32.mrf.mxu0
      %v961 = vadd.f32 %v872, %v960
      %v962 = vpop.f32.mrf.mxu0
      %v963 = vadd.f32 %v874, %v962
      %964 = vmatmul.bf16.gmra.mxu0 %v711
      %v965 = vpop.f32.mrf.mxu0
      %v966 = vadd.f32 %v877, %v965
      %v967 = vpop.f32.mrf.mxu0
      %v968 = vadd.f32 %v879, %v967
      %969 = vmatmul.bf16.gmra.mxu0 %v714
      %v970 = vpop.f32.mrf.mxu0
      %v971 = vadd.f32 %v882, %v970
      %v972 = vpop.f32.mrf.mxu0
      %v973 = vadd.f32 %v884, %v972
      %974 = vmatmul.bf16.gmra.mxu0 %v717
      %v975 = vpop.f32.mrf.mxu0
      %v976 = vadd.f32 %v887, %v975
      %v977 = vpop.f32.mrf.mxu0
      %v978 = vadd.f32 %v889, %v977
      %979 = vmatmul.bf16.gmra.mxu0 %v720
      %v980 = vpop.f32.mrf.mxu0
      %v981 = vadd.f32 %v892, %v980
      %v982 = vpop.f32.mrf.mxu0
      %v983 = vadd.f32 %v894, %v982
      %984 = vmatmul.bf16.gmra.mxu0 %v723
      %v985 = vpop.f32.mrf.mxu0
      %v986 = vadd.f32 %v897, %v985
      %v987 = vpop.f32.mrf.mxu0
      %v988 = vadd.f32 %v899, %v987
      %989 = vmatmul.bf16.gmra.mxu0 %v726
      %v990 = vpop.f32.mrf.mxu0
      %v991 = vadd.f32 %v902, %v990
      %v992 = vpop.f32.mrf.mxu0
      %v993 = vadd.f32 %v904, %v992
      %994 = vdwg.mxu0
      %v995 = vld [vmem:[%s218] sm:$0xf]
      %v996 = vld [vmem:[%s218 + $0x4] sm:$0xf]
      %v997 = vld [vmem:[%s218 + $0x8] sm:$0xf]
      %v998 = vld [vmem:[%s218 + $0xc] sm:$0xf]
      %v999 = vld [vmem:[%s218 + $0x10] sm:$0xf]
      %v1000 = vld [vmem:[%s218 + $0x14] sm:$0xf]
      %v1001 = vld [vmem:[%s218 + $0x18] sm:$0xf]
      %v1002 = vld [vmem:[%s218 + $0x1c] sm:$0xf]
      %v1003 = vld [vmem:[%s218 + $0x20] sm:$0xf]
      %v1004 = vld [vmem:[%s218 + $0x24] sm:$0xf]
      %v1005 = vld [vmem:[%s218 + $0x28] sm:$0xf]
      %v1006 = vld [vmem:[%s218 + $0x2c] sm:$0xf]
      %v1007 = vld [vmem:[%s218 + $0x30] sm:$0xf]
      %v1008 = vld [vmem:[%s218 + $0x34] sm:$0xf]
      %v1009 = vld [vmem:[%s218 + $0x38] sm:$0xf]
      %v1010 = vld [vmem:[%s218 + $0x3c] sm:$0xf]
      %v1011 = vld [vmem:[%s218 + $0x40] sm:$0xf]
      %v1012 = vld [vmem:[%s218 + $0x44] sm:$0xf]
      %v1013 = vld [vmem:[%s218 + $0x48] sm:$0xf]
      %v1014 = vld [vmem:[%s218 + $0x4c] sm:$0xf]
      %v1015 = vld [vmem:[%s218 + $0x50] sm:$0xf]
      %v1016 = vld [vmem:[%s218 + $0x54] sm:$0xf]
      %v1017 = vld [vmem:[%s218 + $0x58] sm:$0xf]
      %v1018 = vld [vmem:[%s218 + $0x5c] sm:$0xf]
      %v1019 = vld [vmem:[%s218 + $0x60] sm:$0xf]
      %v1020 = vld [vmem:[%s218 + $0x64] sm:$0xf]
      %v1021 = vld [vmem:[%s218 + $0x68] sm:$0xf]
      %v1022 = vld [vmem:[%s218 + $0x6c] sm:$0xf]
      %v1023 = vld [vmem:[%s218 + $0x70] sm:$0xf]
      %v1024 = vld [vmem:[%s218 + $0x74] sm:$0xf]
      %v1025 = vld [vmem:[%s218 + $0x78] sm:$0xf]
      %v1026 = vld [vmem:[%s218 + $0x7c] sm:$0xf]
      %v1027 = vunpack.c.l.bf16 %v995
      %v1028 = vunpack.c.l.bf16 %v996
      %v1029 = vunpack.c.l.bf16 %v997
      %v1030 = vunpack.c.l.bf16 %v998
      %v1031 = vunpack.c.l.bf16 %v999
      %v1032 = vunpack.c.l.bf16 %v1000
      %v1033 = vunpack.c.l.bf16 %v1001
      %v1034 = vunpack.c.l.bf16 %v1002
      %v1035 = vunpack.c.l.bf16 %v1003
      %v1036 = vunpack.c.l.bf16 %v1004
      %v1037 = vunpack.c.l.bf16 %v1005
      %v1038 = vunpack.c.l.bf16 %v1006
      %v1039 = vunpack.c.l.bf16 %v1007
      %v1040 = vunpack.c.l.bf16 %v1008
      %v1041 = vunpack.c.l.bf16 %v1009
      %v1042 = vunpack.c.l.bf16 %v1010
      %v1043 = vunpack.c.l.bf16 %v1011
      %v1044 = vunpack.c.l.bf16 %v1012
      %v1045 = vunpack.c.l.bf16 %v1013
      %v1046 = vunpack.c.l.bf16 %v1014
      %v1047 = vunpack.c.l.bf16 %v1015
      %v1048 = vunpack.c.l.bf16 %v1016
      %v1049 = vunpack.c.l.bf16 %v1017
      %v1050 = vunpack.c.l.bf16 %v1018
      %v1051 = vunpack.c.l.bf16 %v1019
      %v1052 = vunpack.c.l.bf16 %v1020
      %v1053 = vunpack.c.l.bf16 %v1021
      %v1054 = vunpack.c.l.bf16 %v1022
      %v1055 = vunpack.c.l.bf16 %v1023
      %v1056 = vunpack.c.l.bf16 %v1024
      %v1057 = vunpack.c.l.bf16 %v1025
      %v1058 = vunpack.c.l.bf16 %v1026
      %v1059 = vadd.f32 %v916, %v1027
      %v1060 = vadd.f32 %v918, %v1028
      %v1061 = vadd.f32 %v921, %v1029
      %v1062 = vadd.f32 %v923, %v1030
      %v1063 = vadd.f32 %v926, %v1031
      %v1064 = vadd.f32 %v928, %v1032
      %v1065 = vadd.f32 %v931, %v1033
      %v1066 = vadd.f32 %v933, %v1034
      %v1067 = vadd.f32 %v936, %v1035
      %v1068 = vadd.f32 %v938, %v1036
      %v1069 = vadd.f32 %v941, %v1037
      %v1070 = vadd.f32 %v943, %v1038
      %v1071 = vadd.f32 %v946, %v1039
      %v1072 = vadd.f32 %v948, %v1040
      %v1073 = vadd.f32 %v951, %v1041
      %v1074 = vadd.f32 %v953, %v1042
      %v1075 = vadd.f32 %v956, %v1043
      %v1076 = vadd.f32 %v958, %v1044
      %v1077 = vadd.f32 %v961, %v1045
      %v1078 = vadd.f32 %v963, %v1046
      %v1079 = vadd.f32 %v966, %v1047
      %v1080 = vadd.f32 %v968, %v1048
      %v1081 = vadd.f32 %v971, %v1049
      %v1082 = vadd.f32 %v973, %v1050
      %v1083 = vadd.f32 %v976, %v1051
      %v1084 = vadd.f32 %v978, %v1052
      %v1085 = vadd.f32 %v981, %v1053
      %v1086 = vadd.f32 %v983, %v1054
      %v1087 = vadd.f32 %v986, %v1055
      %v1088 = vadd.f32 %v988, %v1056
      %v1089 = vadd.f32 %v991, %v1057
      %v1090 = vadd.f32 %v993, %v1058
      %v1091 = vmax.f32 %v1059, 0.0
      %v1092 = vmax.f32 %v1060, 0.0
      %v1093 = vmax.f32 %v1061, 0.0
      %v1094 = vmax.f32 %v1062, 0.0
      %v1095 = vmax.f32 %v1063, 0.0
      %v1096 = vmax.f32 %v1064, 0.0
      %v1097 = vmax.f32 %v1065, 0.0
      %v1098 = vmax.f32 %v1066, 0.0
      %v1099 = vmax.f32 %v1067, 0.0
      %v1100 = vmax.f32 %v1068, 0.0
      %v1101 = vmax.f32 %v1069, 0.0
      %v1102 = vmax.f32 %v1070, 0.0
      %v1103 = vmax.f32 %v1071, 0.0
      %v1104 = vmax.f32 %v1072, 0.0
      %v1105 = vmax.f32 %v1073, 0.0
      %v1106 = vmax.f32 %v1074, 0.0
      %v1107 = vmax.f32 %v1075, 0.0
      %v1108 = vmax.f32 %v1076, 0.0
      %v1109 = vmax.f32 %v1077, 0.0
      %v1110 = vmax.f32 %v1078, 0.0
      %v1111 = vmax.f32 %v1079, 0.0
      %v1112 = vmax.f32 %v1080, 0.0
      %v1113 = vmax.f32 %v1081, 0.0
      %v1114 = vmax.f32 %v1082, 0.0
      %v1115 = vmax.f32 %v1083, 0.0
      %v1116 = vmax.f32 %v1084, 0.0
      %v1117 = vmax.f32 %v1085, 0.0
      %v1118 = vmax.f32 %v1086, 0.0
      %v1119 = vmax.f32 %v1087, 0.0
      %v1120 = vmax.f32 %v1088, 0.0
      %v1121 = vmax.f32 %v1089, 0.0
      %v1122 = vmax.f32 %v1090, 0.0
      %vm1123 = vcmask 64512
      %1124 = vst.msk [vmem:[%s224] sm:$0xff] %vm1123, %v1091
      %1125 = vst.msk [vmem:[%s224 + $0x8] sm:$0xff] %vm1123, %v1092
      %1126 = vst.msk [vmem:[%s224 + $0x10] sm:$0xff] %vm1123, %v1093
      %1127 = vst.msk [vmem:[%s224 + $0x18] sm:$0xff] %vm1123, %v1094
      %1128 = vst.msk [vmem:[%s224 + $0x20] sm:$0xff] %vm1123, %v1095
      %1129 = vst.msk [vmem:[%s224 + $0x28] sm:$0xff] %vm1123, %v1096
      %1130 = vst.msk [vmem:[%s224 + $0x30] sm:$0xff] %vm1123, %v1097
      %1131 = vst.msk [vmem:[%s224 + $0x38] sm:$0xff] %vm1123, %v1098
      %1132 = vst.msk [vmem:[%s224 + $0x40] sm:$0xff] %vm1123, %v1099
      %1133 = vst.msk [vmem:[%s224 + $0x48] sm:$0xff] %vm1123, %v1100
      %1134 = vst.msk [vmem:[%s224 + $0x50] sm:$0xff] %vm1123, %v1101
      %1135 = vst.msk [vmem:[%s224 + $0x58] sm:$0xff] %vm1123, %v1102
      %1136 = vst.msk [vmem:[%s224 + $0x60] sm:$0xff] %vm1123, %v1103
      %1137 = vst.msk [vmem:[%s224 + $0x68] sm:$0xff] %vm1123, %v1104
      %1138 = vst.msk [vmem:[%s224 + $0x70] sm:$0xff] %vm1123, %v1105
      %1139 = vst.msk [vmem:[%s224 + $0x78] sm:$0xff] %vm1123, %v1106
      %1140 = vst.msk [vmem:[%s224 + $0x80] sm:$0xff] %vm1123, %v1107
      %1141 = vst.msk [vmem:[%s224 + $0x88] sm:$0xff] %vm1123, %v1108
      %1142 = vst.msk [vmem:[%s224 + $0x90] sm:$0xff] %vm1123, %v1109
      %1143 = vst.msk [vmem:[%s224 + $0x98] sm:$0xff] %vm1123, %v1110
      %1144 = vst.msk [vmem:[%s224 + $0xa0] sm:$0xff] %vm1123, %v1111
      %1145 = vst.msk [vmem:[%s224 + $0xa8] sm:$0xff] %vm1123, %v1112
      %1146 = vst.msk [vmem:[%s224 + $0xb0] sm:$0xff] %vm1123, %v1113
      %1147 = vst.msk [vmem:[%s224 + $0xb8] sm:$0xff] %vm1123, %v1114
      %1148 = vst.msk [vmem:[%s224 + $0xc0] sm:$0xff] %vm1123, %v1115
      %1149 = vst.msk [vmem:[%s224 + $0xc8] sm:$0xff] %vm1123, %v1116
      %1150 = vst.msk [vmem:[%s224 + $0xd0] sm:$0xff] %vm1123, %v1117
      %1151 = vst.msk [vmem:[%s224 + $0xd8] sm:$0xff] %vm1123, %v1118
      %1152 = vst.msk [vmem:[%s224 + $0xe0] sm:$0xff] %vm1123, %v1119
      %1153 = vst.msk [vmem:[%s224 + $0xe8] sm:$0xff] %vm1123, %v1120
      %1154 = vst.msk [vmem:[%s224 + $0xf0] sm:$0xff] %vm1123, %v1121
      %1155 = vst.msk [vmem:[%s224 + $0xf8] sm:$0xff] %vm1123, %v1122
      %s1156 = smul.u32 32, %s15
      %p1157 = scmp.lt.s32.totalorder %s1156, 63
      %s1158 = scalar_select %p1157, %s1156, 63
      %s1159 = smul.addr %s1158, 8
      %s1160 = scalar_lea.vmem %s4, %s1159
      // Predicated region
      $region37: #{cdc1_forward.9} parent=35 // pred_check
        %p1161 = pneg %p127
      $region38: #{cdc1_forward.9} parent=35 // pred_check_branch
        %1163 = sbr.rel (%p1161) target = $region40
      $region39: #{cdc1_forward.9} parent=35 // pred_region
        %s1164 = smul.u32 32, %s15
      $region40: #{cdc1_forward.9} parent=35 // pred_fallthru
        _
    $region36: #{cdc1_forward.9} parent=5 // pred_fallthru
      _
    %p1165 = scmp.le.s32.totalorder 2, %s10
    // Predicated region
    $region41: #{cdc1_forward.9} parent=5 // pred_check
      %p1166 = pneg %p1165
    $region42: #{cdc1_forward.9} parent=5 // pred_check_branch
      %1168 = sbr.rel (%p1166) target = $region44
    $region43: #{cdc1_forward.9} parent=5 // pred_region
      %s1169 = ssub.s32 %s10, 2
      // Predicated region
      $region45: #{cdc1_forward.9} parent=43 // pred_check
        %p1170 = pneg %p133
      $region46: #{cdc1_forward.9} parent=43 // pred_check_branch
        %1172 = sbr.rel (%p1170) target = $region48
      $region47: #{cdc1_forward.9} parent=43 // pred_region
        %s1173 = smul.u32 32, %s16
        %p1174 = scmp.lt.s32.totalorder %s1173, 63
        %s1175 = scalar_select %p1174, %s1173, 63
        %s1176 = smul.addr %s1175, 8
        %s1177 = scalar_lea.vmem %s4, %s1176
      $region48: #{cdc1_forward.9} parent=43 // pred_fallthru
        _
    $region44: #{cdc1_forward.9} parent=5 // pred_fallthru
      _
  $region6: #{cdc1_forward.9} parent=0 // loop_footer
    %s14 = sadd.s32 1, %s10
  $region7: #{cdc1_forward.9} parent=0 // loop_footer_branch
    %9 = sbr.rel target = $region3
  $region8: #{cdc1_forward.9} parent=0 // loop_exit
    _

</llo_original>
